<compile_context>
chip_gen: v7x
topology: tpu7x:2x2x1
jax: 0.10.0
libtpu: 0.0.40
codegen_flags: <defaults>
</compile_context>

<pallas_src>
import functools

import jax
import jax.numpy as jnp
from jax.experimental import pallas as pl
from jax.experimental.pallas import tpu as pltpu

# ----------------------------------------------------------------------------
# Constants mirroring deepsvg's SVGTensor
# ----------------------------------------------------------------------------
# COMMANDS_SIMPLIFIED = ["m", "l", "c", "a", "EOS", "SOS", "z"]
EOS_IDX = 4
N_COMMANDS = 7
N_ARGS = 11

# SVGTensor.CMD_ARGS_MASK  (n_commands, n_args) -- which args are used per cmd
CMD_ARGS_MASK = jnp.array(
    [
        [0, 0, 0, 0, 0, 0, 0, 0, 0, 1, 1],  # m : end point
        [0, 0, 0, 0, 0, 0, 0, 0, 0, 1, 1],  # l : end point
        [0, 0, 0, 0, 0, 1, 1, 1, 1, 1, 1],  # c : 2 control pts + end point
        [1, 1, 1, 1, 1, 0, 0, 0, 0, 1, 1],  # a : arc params + end point
        [0, 0, 0, 0, 0, 0, 0, 0, 0, 0, 0],  # EOS
        [0, 0, 0, 0, 0, 0, 0, 0, 0, 0, 0],  # SOS
        [0, 0, 0, 0, 0, 0, 0, 0, 0, 0, 0],  # z
    ],
    dtype=jnp.float32,
)


# ----------------------------------------------------------------------------
# Chip detection: only v7x has 2 TensorCores per chip; bigger tiles pay there.
# ----------------------------------------------------------------------------
def _tpu_is_v7x():
    try:
        return "v7" in jax.devices()[0].device_kind.lower()
    except Exception:
        return False


_IS_V7X = _tpu_is_v7x()
_N_CORE_SPLIT = 2 if _IS_V7X else 1      # serial grid loop on v5e/v6e -> no split
_DEFAULT_TN = 2048 if _IS_V7X else 1024  # VMEM-safe without vmem_limit_bytes


# ----------------------------------------------------------------------------
# Pallas kernel: masked cross-entropy partial sums (args CE hot path)
# ----------------------------------------------------------------------------
def _masked_ce_kernel(logits_ref, labels_ref, acc_ce_ref, acc_cnt_ref,
                      *, n_rows, tiles_per_core, tn):
    """Accumulates masked CE and mask counts into (8,1) per-core accumulators.

    logits_ref : (tn, C)  native-dtype logits block (bf16 stream, f32 math)
    labels_ref : (tn, 1)  int32 labels; -1 means "masked out"
    acc_ce_ref : (8, 1)   f32 resident per-core accumulator
    acc_cnt_ref: (8, 1)   f32 resident per-core accumulator
    """
    c = pl.program_id(0)   # core-split axis
    i = pl.program_id(1)   # row-tile axis (reduction)

    @pl.when(i == 0)
    def _():
        acc_ce_ref[...] = jnp.zeros_like(acc_ce_ref)
        acc_cnt_ref[...] = jnp.zeros_like(acc_cnt_ref)

    logits = logits_ref[...].astype(jnp.float32)                 # (tn, C)
    labels = labels_ref[...]                                     # (tn, 1) int32

    # Logical (unclamped) global row index of this tile; tiles past the end of
    # the array (clamped in the index_map) and the tail of the last partial
    # block are fully masked here.
    row0 = (c * tiles_per_core + i) * tn
    row_idx = row0 + jax.lax.broadcasted_iota(jnp.int32, (tn, 1), 0)
    valid = (row_idx < n_rows) & (labels >= 0)                   # (tn, 1) bool

    # Single max-shift reused for both terms: the row max cancels between the
    # lse and the picked logit, so only one lane-broadcast of m is live.
    m = jnp.max(logits, axis=-1, keepdims=True)
    shifted = logits - m                                          # (tn, C)
    lse_shifted = jnp.log(jnp.sum(jnp.exp(shifted), axis=-1, keepdims=True))
    col = jax.lax.broadcasted_iota(jnp.int32, logits.shape, 1)
    picked_shifted = jnp.sum(jnp.where(col == labels, shifted, 0.0),
                             axis=-1, keepdims=True)
    # NaN-safe select: garbage in out-of-bounds rows never reaches the sums.
    ce = jnp.where(valid, lse_shifted - picked_shifted, 0.0)      # (tn, 1)
    cnt = valid.astype(jnp.float32)                               # (tn, 1)

    # Lane/sublane-dense accumulation: (tn,1) -> (tn//8, 8, 1) is a free
    # sublane re-view; summing the leading axis is pure VALU work and the
    # resident accumulator is a single vreg.
    acc_ce_ref[...] += jnp.sum(ce.reshape(tn // 8, 8, 1), axis=0)
    acc_cnt_ref[...] += jnp.sum(cnt.reshape(tn // 8, 8, 1), axis=0)


# ----------------------------------------------------------------------------
# Wrapper: mean CE over masked rows = sum(mask * CE) / max(sum(mask), 1)
# ----------------------------------------------------------------------------
def masked_ce_mean(logits, labels, mask, *, tn=None):
    """logits (N, C) (any float dtype), labels (N,) int, mask (N,) {0,1}."""
    N, C = logits.shape
    if tn is None:
        tn = _DEFAULT_TN
    # Clamp the row tile to the (8-rounded) row count for small inputs.
    tn = max(8, min(tn, ((N + 7) // 8) * 8))
    assert tn % 8 == 0

    # Fold the mask into the labels: -1 sentinel => masked out.
    labels_s = jnp.where(mask > 0, labels.astype(jnp.int32),
                         jnp.int32(-1)).reshape(N, 1)

    n_blocks = pl.cdiv(N, tn)
    tiles_per_core = pl.cdiv(n_blocks, _N_CORE_SPLIT)
    max_block = n_blocks - 1

    # Over-covered tiles (only possible when _N_CORE_SPLIT > 1) are clamped to
    # the last valid block; their rows are fully masked in-kernel.
    def row_map(c, i):
        return (jnp.minimum(c * tiles_per_core + i, max_block), 0)

    kernel = functools.partial(
        _masked_ce_kernel, n_rows=N, tiles_per_core=tiles_per_core, tn=tn)

    if _N_CORE_SPLIT > 1:
        # v7x: actually shard the size-2 leading axis across the 2 TensorCores.
        dim_sem = (pltpu.CORE_PARALLEL, pltpu.ARBITRARY)
    else:
        dim_sem = ("arbitrary", "arbitrary")

    acc_ce, acc_cnt = pl.pallas_call(
        kernel,
        out_shape=(
            jax.ShapeDtypeStruct((_N_CORE_SPLIT * 8, 1), jnp.float32),
            jax.ShapeDtypeStruct((_N_CORE_SPLIT * 8, 1), jnp.float32),
        ),
        grid_spec=pltpu.PrefetchScalarGridSpec(
            num_scalar_prefetch=0,
            grid=(_N_CORE_SPLIT, tiles_per_core),
            in_specs=[
                pl.BlockSpec((tn, C), row_map),     # full native class width
                pl.BlockSpec((tn, 1), row_map),
            ],
            out_specs=(
                pl.BlockSpec((8, 1), lambda c, i: (c, 0)),
                pl.BlockSpec((8, 1), lambda c, i: (c, 0)),
            ),
        ),
        compiler_params=pltpu.CompilerParams(dimension_semantics=dim_sem),
    )(logits, labels_s)

    # Tiny final reduction of the per-core accumulators (fuses in XLA).
    # Guard against an all-masked selection (avoid NaN).
    return jnp.sum(acc_ce) / jnp.maximum(jnp.sum(acc_cnt), 1.0)


# ----------------------------------------------------------------------------
# Plain-JAX masked CE for the tiny command loss (C = 7): lane-sparse in a
# Pallas block, and ~400x smaller than the args logits, so XLA handles it.
# ----------------------------------------------------------------------------
def masked_ce_mean_jax(logits, labels, mask):
    logits = logits.astype(jnp.float32)
    labels = labels.astype(jnp.int32)
    mask = mask.astype(jnp.float32)
    m = jnp.max(logits, axis=-1, keepdims=True)
    lse = jnp.log(jnp.sum(jnp.exp(logits - m), axis=-1)) + m[..., 0]
    picked = jnp.take_along_axis(logits, labels[..., None], axis=-1)[..., 0]
    ce = lse - picked
    return jnp.sum(ce * mask) / jnp.maximum(jnp.sum(mask), 1.0)


# ----------------------------------------------------------------------------
# Mask helpers (deepsvg model/utils.py semantics), cheap glue kept in JAX
# ----------------------------------------------------------------------------
def _get_visibility_mask(commands):
    # commands: (..., S) int; True if the group is not entirely padding.
    S = commands.shape[-1]
    return jnp.sum((commands == EOS_IDX).astype(jnp.int32), axis=-1) < (S - 1)


def _get_padding_mask_extended(commands):
    # padding_mask = cumsum(cmd == EOS) == 0, extended by one position to
    # include the final EOS token in the loss.
    pm = (jnp.cumsum((commands == EOS_IDX).astype(jnp.int32), axis=-1) == 0).astype(
        jnp.float32
    )
    ext_tail = jnp.minimum(pm[..., 1:] + pm[..., :-1], 1.0)
    return jnp.concatenate([pm[..., :1], ext_tail], axis=-1)


# ----------------------------------------------------------------------------
# SVGLoss forward
# ----------------------------------------------------------------------------
class SVGLossConfig:
    use_vae = True
    decode_stages = 2
    rel_targets = False
    n_commands = N_COMMANDS
    n_args = N_ARGS
    args_dim = 64  # small synthetic value (deepsvg default 256)


def svg_loss_forward(cfg, output, labels, weights):
    args_dim_loss = 2 * cfg.args_dim if cfg.rel_targets else cfg.args_dim + 1
    loss = jnp.float32(0.0)
    res = {}

    if cfg.use_vae:
        # Tiny (B, Z) reduction: plain JAX (a pallas_call would dwarf the math).
        mu = output["mu"].astype(jnp.float32)
        logsigma = output["logsigma"].astype(jnp.float32)
        loss_kl = -0.5 * jnp.mean(1.0 + logsigma - mu * mu - jnp.exp(logsigma))
        loss_kl = jnp.maximum(loss_kl, weights["kl_tolerance"])
        loss = loss + weights["loss_kl_weight"] * loss_kl
        res["loss_kl"] = loss_kl

    tgt_commands, tgt_args = output["tgt_commands"], output["tgt_args"]
    visibility_mask = _get_visibility_mask(tgt_commands)                   # (B, G) bool
    padding_mask = _get_padding_mask_extended(tgt_commands) * visibility_mask[
        ..., None
    ].astype(jnp.float32)                                                  # (B, G, S)

    command_logits, args_logits = output["command_logits"], output["args_logits"]

    if cfg.decode_stages == 2:
        # Visibility CE over B*G rows with C=2: tiny, plain JAX.
        vis_logits = output["visibility_logits"].reshape(-1, 2).astype(jnp.float32)
        vis_labels = visibility_mask.reshape(-1).astype(jnp.int32)
        lse = jax.nn.logsumexp(vis_logits, axis=-1)
        picked = jnp.take_along_axis(vis_logits, vis_labels[:, None], axis=-1)[:, 0]
        loss_visibility = jnp.mean(lse - picked)
        loss = loss + weights["loss_visibility_weight"] * loss_visibility
        res["loss_visibility"] = loss_visibility

    # drop the SOS position
    tgt_commands_s = tgt_commands[..., 1:]
    tgt_args_s = tgt_args[..., 1:, :]
    padding_mask_s = padding_mask[..., 1:]

    # Matches the PyTorch spec: mask = cmd_args_mask[tgt_commands] (no AND
    # with padding/visibility in the reference module).
    mask = CMD_ARGS_MASK[tgt_commands_s]                                   # (B, G, S-1, n_args)

    # command cross entropy over padding-masked positions (plain JAX, C = 7)
    cmd_logits_flat = command_logits.reshape(-1, cfg.n_commands)
    cmd_labels_flat = tgt_commands_s.reshape(-1)
    cmd_mask_flat = padding_mask_s.reshape(-1)
    loss_cmd = masked_ce_mean_jax(cmd_logits_flat, cmd_labels_flat, cmd_mask_flat)

    # args cross entropy over cmd-args-masked positions, targets shifted by +1
    # (Pallas kernel -- the hot path; logits streamed in native/bf16 dtype).
    args_logits_flat = args_logits.reshape(-1, args_dim_loss)
    args_labels_flat = (tgt_args_s + 1).reshape(-1)
    args_mask_flat = mask.reshape(-1)
    loss_args = masked_ce_mean(args_logits_flat, args_labels_flat, args_mask_flat)

    loss = loss + weights["loss_cmd_weight"] * loss_cmd + weights["loss_args_weight"] * loss_args
    res.update({"loss": loss, "loss_cmd": loss_cmd, "loss_args": loss_args})
    return res


# ----------------------------------------------------------------------------
# Demo
# ----------------------------------------------------------------------------
if __name__ == "__main__":
    cfg = SVGLossConfig()
    B, G, S = 2, 2, 8          # batch, groups, sequence length (incl. SOS)
    Z = 32                     # latent dim
    args_dim_loss = cfg.args_dim + 1

    key = jax.random.PRNGKey(0)
    ks = jax.random.split(key, 8)

    output = {
        "mu": jax.random.normal(ks[0], (B, Z), jnp.float32),
        "logsigma": jax.random.normal(ks[1], (B, Z), jnp.float32) * 0.1,
        "tgt_commands": jax.random.randint(ks[2], (B, G, S), 0, N_COMMANDS),
        "tgt_args": jax.random.randint(ks[3], (B, G, S, N_ARGS), -1, cfg.args_dim),
        "command_logits": jax.random.normal(ks[4], (B, G, S - 1, cfg.n_commands), jnp.float32),
        # args logits in the model's native bf16 -- streamed to the kernel as-is
        "args_logits": jax.random.normal(ks[5], (B, G, S - 1, N_ARGS, args_dim_loss), jnp.bfloat16),
        "visibility_logits": jax.random.normal(ks[6], (B, G, 2), jnp.float32),
    }
    weights = {
        "kl_tolerance": 0.1,
        "loss_kl_weight": 1.0,
        "loss_visibility_weight": 1.0,
        "loss_cmd_weight": 1.0,
        "loss_args_weight": 2.0,
    }

    res = svg_loss_forward(cfg, output, labels=None, weights=weights)
    res = jax.tree_util.tree_map(jax.block_until_ready, res)

    for k, v in res.items():
        assert jnp.isfinite(v), f"{k} is not finite"
    print("KERNEL_OK")
</pallas_src>

<mosaic_0001>
module attributes {stable_mosaic.version = 11 : i64} {
  func.func @_masked_ce_kernel(%arg0: i32, %arg1: i32, %arg2: memref<312x65xbf16, #tpu.memory_space<vmem>>, %arg3: memref<312x1xi32, #tpu.memory_space<vmem>>, %arg4: memref<8x1xf32, #tpu.memory_space<vmem>>, %arg5: memref<8x1xf32, #tpu.memory_space<vmem>>) attributes {dimension_semantics = [#tpu.dimension_semantics<arbitrary>, #tpu.dimension_semantics<arbitrary>], iteration_bounds = array<i64: 1, 1>, scalar_prefetch = 0 : i64, scratch_operands = 0 : i64, tpu.core_type = #tpu.core_type<tc>, window_params = [{transform_indices = @transform_0, window_bounds = array<i64: 312, 65>}, {transform_indices = @transform_1, window_bounds = array<i64: 312, 1>}, {transform_indices = @transform_2, window_bounds = array<i64: 8, 1>}, {transform_indices = @transform_3, window_bounds = array<i64: 8, 1>}]} {
    %c0_i32 = arith.constant 0 : i32
    %0 = arith.cmpi eq, %arg1, %c0_i32 : i32
    %1 = arith.extui %0 : i1 to i32
    %c0_i32_0 = arith.constant 0 : i32
    %2 = arith.cmpi ne, %1, %c0_i32_0 : i32
    scf.if %2 {
      %cst_19 = arith.constant 0.000000e+00 : f32
      %47 = vector.broadcast %cst_19 : f32 to vector<8x1xf32>
      %c0_20 = arith.constant 0 : index
      %c0_21 = arith.constant 0 : index
      %48 = vector.load %arg4[%c0_20, %c0_21] : memref<8x1xf32, #tpu.memory_space<vmem>>, vector<8x1xf32>
      tpu.vector_store %arg4[%c0_20, %c0_21], %47 {strides = array<i32>} : memref<8x1xf32, #tpu.memory_space<vmem>>, vector<8x1xf32>,
      %cst_22 = arith.constant 0.000000e+00 : f32
      %49 = vector.broadcast %cst_22 : f32 to vector<8x1xf32>
      %c0_23 = arith.constant 0 : index
      %c0_24 = arith.constant 0 : index
      %50 = vector.load %arg5[%c0_23, %c0_24] : memref<8x1xf32, #tpu.memory_space<vmem>>, vector<8x1xf32>
      tpu.vector_store %arg5[%c0_23, %c0_24], %49 {strides = array<i32>} : memref<8x1xf32, #tpu.memory_space<vmem>>, vector<8x1xf32>,
    } else {
    }
    %c0 = arith.constant 0 : index
    %c0_1 = arith.constant 0 : index
    %3 = vector.load %arg2[%c0, %c0_1] : memref<312x65xbf16, #tpu.memory_space<vmem>>, vector<312x65xbf16>
    %4 = arith.extf %3 : vector<312x65xbf16> to vector<312x65xf32>
    %c0_2 = arith.constant 0 : index
    %c0_3 = arith.constant 0 : index
    %5 = vector.load %arg3[%c0_2, %c0_3] : memref<312x1xi32, #tpu.memory_space<vmem>>, vector<312x1xi32>
    %c1_i32 = arith.constant 1 : i32
    %6 = arith.muli %arg0, %c1_i32 : i32
    %7 = arith.addi %6, %arg1 : i32
    %c312_i32 = arith.constant 312 : i32
    %8 = arith.muli %7, %c312_i32 : i32
    %9 = tpu.iota {dimensions = array<i32: 0>} : vector<312x1xi32>
    %10 = vector.broadcast %8 : i32 to vector<312x1xi32>
    %11 = arith.addi %10, %9 : vector<312x1xi32>
    %c308_i32 = arith.constant 308 : i32
    %12 = vector.broadcast %c308_i32 : i32 to vector<312x1xi32>
    %13 = arith.cmpi slt, %11, %12 : vector<312x1xi32>
    %c0_i32_4 = arith.constant 0 : i32
    %14 = vector.broadcast %c0_i32_4 : i32 to vector<312x1xi32>
    %15 = arith.cmpi sge, %5, %14 : vector<312x1xi32>
    %16 = arith.andi %13, %15 : vector<312x1xi1>
    %cst = arith.constant dense<0xFF800000> : vector<312xf32>
    %17 = vector.multi_reduction <maximumf>, %4, %cst [1] : vector<312x65xf32> to vector<312xf32>
    %18 = vector.shape_cast %17 : vector<312xf32> to vector<312x1xf32>
    %19 = vector.broadcast %18 : vector<312x1xf32> to vector<312x65xf32>
    %20 = arith.subf %4, %19 : vector<312x65xf32>
    %21 = math.exp %20 : vector<312x65xf32>
    %cst_5 = arith.constant dense<0.000000e+00> : vector<312xf32>
    %22 = vector.multi_reduction <add>, %21, %cst_5 [1] : vector<312x65xf32> to vector<312xf32>
    %23 = vector.shape_cast %22 : vector<312xf32> to vector<312x1xf32>
    %24 = math.log %23 : vector<312x1xf32>
    %25 = tpu.iota {dimensions = array<i32: 1>} : vector<312x65xi32>
    %26 = vector.broadcast %5 : vector<312x1xi32> to vector<312x65xi32>
    %27 = arith.cmpi eq, %25, %26 : vector<312x65xi32>
    %cst_6 = arith.constant 0.000000e+00 : f32
    %28 = vector.broadcast %cst_6 : f32 to vector<312x65xf32>
    %29 = arith.select %27, %20, %28 : vector<312x65xi1>, vector<312x65xf32>
    %cst_7 = arith.constant dense<0.000000e+00> : vector<312xf32>
    %30 = vector.multi_reduction <add>, %29, %cst_7 [1] : vector<312x65xf32> to vector<312xf32>
    %31 = vector.shape_cast %30 : vector<312xf32> to vector<312x1xf32>
    %32 = arith.subf %24, %31 : vector<312x1xf32>
    %cst_8 = arith.constant 0.000000e+00 : f32
    %33 = vector.broadcast %cst_8 : f32 to vector<312x1xf32>
    %34 = arith.select %16, %32, %33 : vector<312x1xi1>, vector<312x1xf32>
    %35 = arith.extui %16 : vector<312x1xi1> to vector<312x1xi32>
    %36 = arith.sitofp %35 : vector<312x1xi32> to vector<312x1xf32>
    %c0_9 = arith.constant 0 : index
    %c0_10 = arith.constant 0 : index
    %37 = vector.load %arg4[%c0_9, %c0_10] : memref<8x1xf32, #tpu.memory_space<vmem>>, vector<8x1xf32>
    %38 = vector.shape_cast %34 : vector<312x1xf32> to vector<39x8x1xf32>
    %cst_11 = arith.constant dense<0.000000e+00> : vector<8x1xf32>
    %39 = vector.multi_reduction <add>, %38, %cst_11 [0] : vector<39x8x1xf32> to vector<8x1xf32>
    %40 = arith.addf %37, %39 : vector<8x1xf32>
    %c0_12 = arith.constant 0 : index
    %c0_13 = arith.constant 0 : index
    %41 = vector.load %arg4[%c0_12, %c0_13] : memref<8x1xf32, #tpu.memory_space<vmem>>, vector<8x1xf32>
    tpu.vector_store %arg4[%c0_12, %c0_13], %40 {strides = array<i32>} : memref<8x1xf32, #tpu.memory_space<vmem>>, vector<8x1xf32>,
    %c0_14 = arith.constant 0 : index
    %c0_15 = arith.constant 0 : index
    %42 = vector.load %arg5[%c0_14, %c0_15] : memref<8x1xf32, #tpu.memory_space<vmem>>, vector<8x1xf32>
    %43 = vector.shape_cast %36 : vector<312x1xf32> to vector<39x8x1xf32>
    %cst_16 = arith.constant dense<0.000000e+00> : vector<8x1xf32>
    %44 = vector.multi_reduction <add>, %43, %cst_16 [0] : vector<39x8x1xf32> to vector<8x1xf32>
    %45 = arith.addf %42, %44 : vector<8x1xf32>
    %c0_17 = arith.constant 0 : index
    %c0_18 = arith.constant 0 : index
    %46 = vector.load %arg5[%c0_17, %c0_18] : memref<8x1xf32, #tpu.memory_space<vmem>>, vector<8x1xf32>
    tpu.vector_store %arg5[%c0_17, %c0_18], %45 {strides = array<i32>} : memref<8x1xf32, #tpu.memory_space<vmem>>, vector<8x1xf32>,
    return
  }
  func.func @transform_0(%arg0: i32, %arg1: i32) -> (i32, i32) {
    %c1_i32 = arith.constant 1 : i32
    %0 = arith.muli %arg0, %c1_i32 : i32
    %1 = arith.addi %0, %arg1 : i32
    %c0_i32 = arith.constant 0 : i32
    %2 = arith.minsi %1, %c0_i32 : i32
    %c0_i32_0 = arith.constant 0 : i32
    %c0_i32_1 = arith.constant 0 : i32
    return %2, %c0_i32_0 : i32, i32
  }
  func.func @transform_1(%arg0: i32, %arg1: i32) -> (i32, i32) {
    %c1_i32 = arith.constant 1 : i32
    %0 = arith.muli %arg0, %c1_i32 : i32
    %1 = arith.addi %0, %arg1 : i32
    %c0_i32 = arith.constant 0 : i32
    %2 = arith.minsi %1, %c0_i32 : i32
    %c0_i32_0 = arith.constant 0 : i32
    %c0_i32_1 = arith.constant 0 : i32
    return %2, %c0_i32_0 : i32, i32
  }
  func.func @transform_2(%arg0: i32, %arg1: i32) -> (i32, i32) {
    %c0_i32 = arith.constant 0 : i32
    %c0_i32_0 = arith.constant 0 : i32
    return %arg0, %c0_i32 : i32, i32
  }
  func.func @transform_3(%arg0: i32, %arg1: i32) -> (i32, i32) {
    %c0_i32 = arith.constant 0 : i32
    %c0_i32_0 = arith.constant 0 : i32
    return %arg0, %c0_i32 : i32, i32
  }
}

</mosaic_0001>

<llo_original>
// kernel: tpu_custom_call.1
$region0: #{tpu_custom_call.1}
  #allocation0 [shape = 'u32[]', space=smem, size = 0x4, offset = 0x4, fixed_abs, tag = 'smem constant byte address 0x4 - core index']
  #allocation1 [shape = 'u32[144,128]{1,0:T(1,128)}', space=vmem, size = 0x12000, scoped, tag = 'internal scratch']
  %s0 = inlined_call_operand.vmem [shape: bf16[308,65], index: 0, kind: input, shape index: {}]
  %s1 = inlined_call_operand.vmem [shape: s32[308,1], index: 1, kind: input, shape index: {}]
  %s2 = inlined_call_operand.vmem [shape: f32[8,1], index: 2, kind: output, shape index: {0}]
  %s3 = inlined_call_operand.vmem [shape: f32[8,1], index: 3, kind: output, shape index: {1}]
  %4 = xla_tuple %s2, %s3
  %s5 = sld [smem:[#allocation0]]
  $region30: #{tpu_custom_call.1} parent=0
    _
  %s7 = ssub.s32 1, %s5
  %s8 = scalar_select 0, %s7, %s5
  // Predicated region
  $region2: #{tpu_custom_call.1} parent=0 // pred_check
    _
  $region3: #{tpu_custom_call.1} parent=0 // pred_check_branch
    %10 = sbr.rel (0) target = $region5
  $region4: #{tpu_custom_call.1} parent=0 // pred_region
    %s11 = sadd.s32 0, 0
    %p12 = scmp.lt.s32.totalorder %s11, 0
    %s13 = scalar_select %p12, %s11, 0
    %s14 = smul.u32 39, %s13
    %p15 = scmp.lt.s32.totalorder %s14, 38
    %s16 = scalar_select %p15, %s14, 38
    %s17 = smul.addr %s16, 4
    %s18 = scalar_lea.vmem %s0, %s17
    %s19 = sadd.s32 0, 0
    %p20 = scmp.lt.s32.totalorder %s19, 0
    %s21 = scalar_select %p20, %s19, 0
    %s22 = smul.u32 39, %s21
  $region5: #{tpu_custom_call.1} parent=0 // pred_fallthru
    _
  // Predicated region
  $region6: #{tpu_custom_call.1} parent=0 // pred_check
    _
  $region7: #{tpu_custom_call.1} parent=0 // pred_check_branch
    %24 = sbr.rel (0) target = $region9
  $region8: #{tpu_custom_call.1} parent=0 // pred_region
    %s25 = sadd.s32 0, 0
    %p26 = scmp.lt.s32.totalorder %s25, 0
    %s27 = scalar_select %p26, %s25, 0
    %s28 = smul.u32 39, %s27
    %p29 = scmp.lt.s32.totalorder %s28, 38
    %s30 = scalar_select %p29, %s28, 38
    %s31 = smul.addr %s30, 8
    %s32 = scalar_lea.vmem %s1, %s31
    %s33 = sadd.s32 0, 0
    %p34 = scmp.lt.s32.totalorder %s33, 0
    %s35 = scalar_select %p34, %s33, 0
    %s36 = smul.u32 39, %s35
  $region9: #{tpu_custom_call.1} parent=0 // pred_fallthru
    _
  %s37 = sadd.s32 0, 0
  %p38 = scmp.lt.s32.totalorder %s37, 0
  %s39 = scalar_select %p38, %s37, 0
  %s40 = smul.u32 39, %s39
  %p41 = scmp.lt.s32.totalorder %s40, 38
  %s42 = scalar_select %p41, %s40, 38
  %s43 = smul.addr %s42, 4
  %s44 = scalar_lea.vmem %s0, %s43
  %s45 = sadd.s32 0, 0
  %p46 = scmp.lt.s32.totalorder %s45, 0
  %s47 = scalar_select %p46, %s45, 0
  %s48 = smul.u32 39, %s47
  %p49 = scmp.lt.s32.totalorder %s48, 38
  %s50 = scalar_select %p49, %s48, 38
  %s51 = smul.addr %s50, 8
  %s52 = scalar_lea.vmem %s1, %s51
  %s53 = sadd.s32 0, 0
  %p54 = scmp.lt.s32.totalorder %s53, 0
  %s55 = scalar_select %p54, %s53, 0
  %s56 = smul.u32 39, %s55
  %p57 = scmp.lt.s32.totalorder %s56, 38
  %s58 = scalar_select %p57, %s56, 38
  %s59 = smul.addr %s58, 4
  %s60 = scalar_lea.vmem %s0, %s59
  %s61 = sadd.s32 0, 0
  %p62 = scmp.lt.s32.totalorder %s61, 0
  %s63 = scalar_select %p62, %s61, 0
  %s64 = smul.u32 39, %s63
  %s65 = sadd.s32 0, 0
  %p66 = scmp.lt.s32.totalorder %s65, 0
  %s67 = scalar_select %p66, %s65, 0
  %s68 = smul.u32 39, %s67
  %p69 = scmp.lt.s32.totalorder %s68, 38
  %s70 = scalar_select %p69, %s68, 38
  %s71 = smul.addr %s70, 8
  %s72 = scalar_lea.vmem %s1, %s71
  %s73 = sadd.s32 0, 0
  %p74 = scmp.lt.s32.totalorder %s73, 0
  %s75 = scalar_select %p74, %s73, 0
  %s76 = smul.u32 39, %s75
  %p77 = scmp.eq.s32.totalorder 0, 0
  // Predicated region
  $region10: #{tpu_custom_call.1} parent=0 // pred_check
    %p78 = pneg %p77
  $region11: #{tpu_custom_call.1} parent=0 // pred_check_branch
    %80 = sbr.rel (%p78) target = $region13
  $region12: #{tpu_custom_call.1} parent=0 // pred_region
    %vm81 = vcmask 7168
    %82 = vst.msk [vmem:[%s2] sm:$0xff] %vm81, 0.0
    %83 = vst.msk [vmem:[%s3] sm:$0xff] %vm81, 0.0
  $region13: #{tpu_custom_call.1} parent=0 // pred_fallthru
    _
  %v84 = vld [vmem:[%s60] sm:$0xf]
  %v85 = vld [vmem:[%s60 + $0x4] sm:$0xf]
  %v86 = vld [vmem:[%s60 + $0x8] sm:$0xf]
  %v87 = vld [vmem:[%s60 + $0xc] sm:$0xf]
  %v88 = vld [vmem:[%s60 + $0x10] sm:$0xf]
  %v89 = vld [vmem:[%s60 + $0x14] sm:$0xf]
  %v90 = vld [vmem:[%s60 + $0x18] sm:$0xf]
  %v91 = vld [vmem:[%s60 + $0x1c] sm:$0xf]
  %v92 = vld [vmem:[%s60 + $0x20] sm:$0xf]
  %v93 = vld [vmem:[%s60 + $0x24] sm:$0xf]
  %v94 = vld [vmem:[%s60 + $0x28] sm:$0xf]
  %v95 = vld [vmem:[%s60 + $0x2c] sm:$0xf]
  %v96 = vld [vmem:[%s60 + $0x30] sm:$0xf]
  %v97 = vld [vmem:[%s60 + $0x34] sm:$0xf]
  %v98 = vld [vmem:[%s60 + $0x38] sm:$0xf]
  %v99 = vld [vmem:[%s60 + $0x3c] sm:$0xf]
  %v100 = vld [vmem:[%s60 + $0x40] sm:$0xf]
  %v101 = vld [vmem:[%s60 + $0x44] sm:$0xf]
  %v102 = vld [vmem:[%s60 + $0x48] sm:$0xf]
  %v103 = vld [vmem:[%s60 + $0x4c] sm:$0xf]
  %v104 = vld [vmem:[%s60 + $0x50] sm:$0xf]
  %v105 = vld [vmem:[%s60 + $0x54] sm:$0xf]
  %v106 = vld [vmem:[%s60 + $0x58] sm:$0xf]
  %v107 = vld [vmem:[%s60 + $0x5c] sm:$0xf]
  %v108 = vld [vmem:[%s60 + $0x60] sm:$0xf]
  %v109 = vld [vmem:[%s60 + $0x64] sm:$0xf]
  %v110 = vld [vmem:[%s60 + $0x68] sm:$0xf]
  %v111 = vld [vmem:[%s60 + $0x6c] sm:$0xf]
  %v112 = vld [vmem:[%s60 + $0x70] sm:$0xf]
  %v113 = vld [vmem:[%s60 + $0x74] sm:$0xf]
  %v114 = vld [vmem:[%s60 + $0x78] sm:$0xf]
  %v115 = vld [vmem:[%s60 + $0x7c] sm:$0xf]
  %v116 = vld [vmem:[%s60 + $0x80] sm:$0xf]
  %v117 = vld [vmem:[%s60 + $0x84] sm:$0xf]
  %v118 = vld [vmem:[%s60 + $0x88] sm:$0xf]
  %v119 = vld [vmem:[%s60 + $0x8c] sm:$0xf]
  %v120 = vld [vmem:[%s60 + $0x90] sm:$0xf]
  %v121 = vld [vmem:[%s60 + $0x94] sm:$0xf]
  %v122 = vld [vmem:[%s60 + $0x98] sm:$0xf]
  %v123 = vunpack.c.l.bf16 %v84
  %v124 = vunpack.c.l.bf16 %v85
  %v125 = vunpack.c.l.bf16 %v86
  %v126 = vunpack.c.l.bf16 %v87
  %v127 = vunpack.c.l.bf16 %v88
  %v128 = vunpack.c.l.bf16 %v89
  %v129 = vunpack.c.l.bf16 %v90
  %v130 = vunpack.c.l.bf16 %v91
  %v131 = vunpack.c.l.bf16 %v92
  %v132 = vunpack.c.l.bf16 %v93
  %v133 = vunpack.c.l.bf16 %v94
  %v134 = vunpack.c.l.bf16 %v95
  %v135 = vunpack.c.l.bf16 %v96
  %v136 = vunpack.c.l.bf16 %v97
  %v137 = vunpack.c.l.bf16 %v98
  %v138 = vunpack.c.l.bf16 %v99
  %v139 = vunpack.c.l.bf16 %v100
  %v140 = vunpack.c.l.bf16 %v101
  %v141 = vunpack.c.l.bf16 %v102
  %v142 = vunpack.c.l.bf16 %v103
  %v143 = vunpack.c.l.bf16 %v104
  %v144 = vunpack.c.l.bf16 %v105
  %v145 = vunpack.c.l.bf16 %v106
  %v146 = vunpack.c.l.bf16 %v107
  %v147 = vunpack.c.l.bf16 %v108
  %v148 = vunpack.c.l.bf16 %v109
  %v149 = vunpack.c.l.bf16 %v110
  %v150 = vunpack.c.l.bf16 %v111
  %v151 = vunpack.c.l.bf16 %v112
  %v152 = vunpack.c.l.bf16 %v113
  %v153 = vunpack.c.l.bf16 %v114
  %v154 = vunpack.c.l.bf16 %v115
  %v155 = vunpack.c.l.bf16 %v116
  %v156 = vunpack.c.l.bf16 %v117
  %v157 = vunpack.c.l.bf16 %v118
  %v158 = vunpack.c.l.bf16 %v119
  %v159 = vunpack.c.l.bf16 %v120
  %v160 = vunpack.c.l.bf16 %v121
  %v161 = vunpack.c.l.bf16 %v122
  %v162 = vld [vmem:[%s72] sm:$0xff]
  %v163 = vld [vmem:[%s72 + $0x8] sm:$0xff]
  %v164 = vld [vmem:[%s72 + $0x10] sm:$0xff]
  %v165 = vld [vmem:[%s72 + $0x18] sm:$0xff]
  %v166 = vld [vmem:[%s72 + $0x20] sm:$0xff]
  %v167 = vld [vmem:[%s72 + $0x28] sm:$0xff]
  %v168 = vld [vmem:[%s72 + $0x30] sm:$0xff]
  %v169 = vld [vmem:[%s72 + $0x38] sm:$0xff]
  %v170 = vld [vmem:[%s72 + $0x40] sm:$0xff]
  %v171 = vld [vmem:[%s72 + $0x48] sm:$0xff]
  %v172 = vld [vmem:[%s72 + $0x50] sm:$0xff]
  %v173 = vld [vmem:[%s72 + $0x58] sm:$0xff]
  %v174 = vld [vmem:[%s72 + $0x60] sm:$0xff]
  %v175 = vld [vmem:[%s72 + $0x68] sm:$0xff]
  %v176 = vld [vmem:[%s72 + $0x70] sm:$0xff]
  %v177 = vld [vmem:[%s72 + $0x78] sm:$0xff]
  %v178 = vld [vmem:[%s72 + $0x80] sm:$0xff]
  %v179 = vld [vmem:[%s72 + $0x88] sm:$0xff]
  %v180 = vld [vmem:[%s72 + $0x90] sm:$0xff]
  %v181 = vld [vmem:[%s72 + $0x98] sm:$0xff]
  %v182 = vld [vmem:[%s72 + $0xa0] sm:$0xff]
  %v183 = vld [vmem:[%s72 + $0xa8] sm:$0xff]
  %v184 = vld [vmem:[%s72 + $0xb0] sm:$0xff]
  %v185 = vld [vmem:[%s72 + $0xb8] sm:$0xff]
  %v186 = vld [vmem:[%s72 + $0xc0] sm:$0xff]
  %v187 = vld [vmem:[%s72 + $0xc8] sm:$0xff]
  %v188 = vld [vmem:[%s72 + $0xd0] sm:$0xff]
  %v189 = vld [vmem:[%s72 + $0xd8] sm:$0xff]
  %v190 = vld [vmem:[%s72 + $0xe0] sm:$0xff]
  %v191 = vld [vmem:[%s72 + $0xe8] sm:$0xff]
  %v192 = vld [vmem:[%s72 + $0xf0] sm:$0xff]
  %v193 = vld [vmem:[%s72 + $0xf8] sm:$0xff]
  %v194 = vld [vmem:[%s72 + $0x100] sm:$0xff]
  %v195 = vld [vmem:[%s72 + $0x108] sm:$0xff]
  %v196 = vld [vmem:[%s72 + $0x110] sm:$0xff]
  %v197 = vld [vmem:[%s72 + $0x118] sm:$0xff]
  %v198 = vld [vmem:[%s72 + $0x120] sm:$0xff]
  %v199 = vld [vmem:[%s72 + $0x128] sm:$0xff]
  %v200 = vld [vmem:[%s72 + $0x130] sm:$0xff]
  %s201 = sadd.s32 0, 0
  %s202 = smul.u32 %s201, 312
  %v203 = vlaneseq
  %v204 = vshrl.u32 %v203, 7
  %v205 = vadd.s32 %v204, 8
  %v206 = vadd.s32 %v204, 16
  %v207 = vadd.s32 %v204, 24
  %v208 = vadd.s32 %v204, 32
  %v209 = vadd.s32 %v204, 40
  %v210 = vadd.s32 %v204, 48
  %v211 = vadd.s32 %v204, 56
  %v212 = vadd.s32 %v204, 64
  %v213 = vadd.s32 %v204, 72
  %v214 = vadd.s32 %v204, 80
  %v215 = vadd.s32 %v204, 88
  %v216 = vadd.s32 %v204, 96
  %v217 = vadd.s32 %v204, 104
  %v218 = vadd.s32 %v204, 112
  %v219 = vadd.s32 %v204, 120
  %v220 = vadd.s32 %v204, 128
  %v221 = vadd.s32 %v204, 136
  %v222 = vadd.s32 %v204, 144
  %v223 = vadd.s32 %v204, 152
  %v224 = vadd.s32 %v204, 160
  %v225 = vadd.s32 %v204, 168
  %v226 = vadd.s32 %v204, 176
  %v227 = vadd.s32 %v204, 184
  %v228 = vadd.s32 %v204, 192
  %v229 = vadd.s32 %v204, 200
  %v230 = vadd.s32 %v204, 208
  %v231 = vadd.s32 %v204, 216
  %v232 = vadd.s32 %v204, 224
  %v233 = vadd.s32 %v204, 232
  %v234 = vadd.s32 %v204, 240
  %v235 = vadd.s32 %v204, 248
  %v236 = vadd.s32 %v204, 256
  %v237 = vadd.s32 %v204, 264
  %v238 = vadd.s32 %v204, 272
  %v239 = vadd.s32 %v204, 280
  %v240 = vadd.s32 %v204, 288
  %v241 = vadd.s32 %v204, 296
  %v242 = vadd.s32 %v204, 304
  %v243 = vstv %s202
  %v244 = vadd.s32 %v243, %v204
  %v245 = vadd.s32 %v243, %v205
  %v246 = vadd.s32 %v243, %v206
  %v247 = vadd.s32 %v243, %v207
  %v248 = vadd.s32 %v243, %v208
  %v249 = vadd.s32 %v243, %v209
  %v250 = vadd.s32 %v243, %v210
  %v251 = vadd.s32 %v243, %v211
  %v252 = vadd.s32 %v243, %v212
  %v253 = vadd.s32 %v243, %v213
  %v254 = vadd.s32 %v243, %v214
  %v255 = vadd.s32 %v243, %v215
  %v256 = vadd.s32 %v243, %v216
  %v257 = vadd.s32 %v243, %v217
  %v258 = vadd.s32 %v243, %v218
  %v259 = vadd.s32 %v243, %v219
  %v260 = vadd.s32 %v243, %v220
  %v261 = vadd.s32 %v243, %v221
  %v262 = vadd.s32 %v243, %v222
  %v263 = vadd.s32 %v243, %v223
  %v264 = vadd.s32 %v243, %v224
  %v265 = vadd.s32 %v243, %v225
  %v266 = vadd.s32 %v243, %v226
  %v267 = vadd.s32 %v243, %v227
  %v268 = vadd.s32 %v243, %v228
  %v269 = vadd.s32 %v243, %v229
  %v270 = vadd.s32 %v243, %v230
  %v271 = vadd.s32 %v243, %v231
  %v272 = vadd.s32 %v243, %v232
  %v273 = vadd.s32 %v243, %v233
  %v274 = vadd.s32 %v243, %v234
  %v275 = vadd.s32 %v243, %v235
  %v276 = vadd.s32 %v243, %v236
  %v277 = vadd.s32 %v243, %v237
  %v278 = vadd.s32 %v243, %v238
  %v279 = vadd.s32 %v243, %v239
  %v280 = vadd.s32 %v243, %v240
  %v281 = vadd.s32 %v243, %v241
  %v282 = vadd.s32 %v243, %v242
  %vm283 = vcmp.lt.s32.totalorder %v244, 308
  %vm284 = vcmp.lt.s32.totalorder %v245, 308
  %vm285 = vcmp.lt.s32.totalorder %v246, 308
  %vm286 = vcmp.lt.s32.totalorder %v247, 308
  %vm287 = vcmp.lt.s32.totalorder %v248, 308
  %vm288 = vcmp.lt.s32.totalorder %v249, 308
  %vm289 = vcmp.lt.s32.totalorder %v250, 308
  %vm290 = vcmp.lt.s32.totalorder %v251, 308
  %vm291 = vcmp.lt.s32.totalorder %v252, 308
  %vm292 = vcmp.lt.s32.totalorder %v253, 308
  %vm293 = vcmp.lt.s32.totalorder %v254, 308
  %vm294 = vcmp.lt.s32.totalorder %v255, 308
  %vm295 = vcmp.lt.s32.totalorder %v256, 308
  %vm296 = vcmp.lt.s32.totalorder %v257, 308
  %vm297 = vcmp.lt.s32.totalorder %v258, 308
  %vm298 = vcmp.lt.s32.totalorder %v259, 308
  %vm299 = vcmp.lt.s32.totalorder %v260, 308
  %vm300 = vcmp.lt.s32.totalorder %v261, 308
  %vm301 = vcmp.lt.s32.totalorder %v262, 308
  %vm302 = vcmp.lt.s32.totalorder %v263, 308
  %vm303 = vcmp.lt.s32.totalorder %v264, 308
  %vm304 = vcmp.lt.s32.totalorder %v265, 308
  %vm305 = vcmp.lt.s32.totalorder %v266, 308
  %vm306 = vcmp.lt.s32.totalorder %v267, 308
  %vm307 = vcmp.lt.s32.totalorder %v268, 308
  %vm308 = vcmp.lt.s32.totalorder %v269, 308
  %vm309 = vcmp.lt.s32.totalorder %v270, 308
  %vm310 = vcmp.lt.s32.totalorder %v271, 308
  %vm311 = vcmp.lt.s32.totalorder %v272, 308
  %vm312 = vcmp.lt.s32.totalorder %v273, 308
  %vm313 = vcmp.lt.s32.totalorder %v274, 308
  %vm314 = vcmp.lt.s32.totalorder %v275, 308
  %vm315 = vcmp.lt.s32.totalorder %v276, 308
  %vm316 = vcmp.lt.s32.totalorder %v277, 308
  %vm317 = vcmp.lt.s32.totalorder %v278, 308
  %vm318 = vcmp.lt.s32.totalorder %v279, 308
  %vm319 = vcmp.lt.s32.totalorder %v280, 308
  %vm320 = vcmp.lt.s32.totalorder %v281, 308
  %vm321 = vcmp.lt.s32.totalorder %v282, 308
  %vm322 = vcmp.ge.s32.totalorder %v162, 0
  %vm323 = vcmp.ge.s32.totalorder %v163, 0
  %vm324 = vcmp.ge.s32.totalorder %v164, 0
  %vm325 = vcmp.ge.s32.totalorder %v165, 0
  %vm326 = vcmp.ge.s32.totalorder %v166, 0
  %vm327 = vcmp.ge.s32.totalorder %v167, 0
  %vm328 = vcmp.ge.s32.totalorder %v168, 0
  %vm329 = vcmp.ge.s32.totalorder %v169, 0
  %vm330 = vcmp.ge.s32.totalorder %v170, 0
  %vm331 = vcmp.ge.s32.totalorder %v171, 0
  %vm332 = vcmp.ge.s32.totalorder %v172, 0
  %vm333 = vcmp.ge.s32.totalorder %v173, 0
  %vm334 = vcmp.ge.s32.totalorder %v174, 0
  %vm335 = vcmp.ge.s32.totalorder %v175, 0
  %vm336 = vcmp.ge.s32.totalorder %v176, 0
  %vm337 = vcmp.ge.s32.totalorder %v177, 0
  %vm338 = vcmp.ge.s32.totalorder %v178, 0
  %vm339 = vcmp.ge.s32.totalorder %v179, 0
  %vm340 = vcmp.ge.s32.totalorder %v180, 0
  %vm341 = vcmp.ge.s32.totalorder %v181, 0
  %vm342 = vcmp.ge.s32.totalorder %v182, 0
  %vm343 = vcmp.ge.s32.totalorder %v183, 0
  %vm344 = vcmp.ge.s32.totalorder %v184, 0
  %vm345 = vcmp.ge.s32.totalorder %v185, 0
  %vm346 = vcmp.ge.s32.totalorder %v186, 0
  %vm347 = vcmp.ge.s32.totalorder %v187, 0
  %vm348 = vcmp.ge.s32.totalorder %v188, 0
  %vm349 = vcmp.ge.s32.totalorder %v189, 0
  %vm350 = vcmp.ge.s32.totalorder %v190, 0
  %vm351 = vcmp.ge.s32.totalorder %v191, 0
  %vm352 = vcmp.ge.s32.totalorder %v192, 0
  %vm353 = vcmp.ge.s32.totalorder %v193, 0
  %vm354 = vcmp.ge.s32.totalorder %v194, 0
  %vm355 = vcmp.ge.s32.totalorder %v195, 0
  %vm356 = vcmp.ge.s32.totalorder %v196, 0
  %vm357 = vcmp.ge.s32.totalorder %v197, 0
  %vm358 = vcmp.ge.s32.totalorder %v198, 0
  %vm359 = vcmp.ge.s32.totalorder %v199, 0
  %vm360 = vcmp.ge.s32.totalorder %v200, 0
  %vm361 = vmand %vm283, %vm322
  %vm362 = vmand %vm284, %vm323
  %vm363 = vmand %vm285, %vm324
  %vm364 = vmand %vm286, %vm325
  %vm365 = vmand %vm287, %vm326
  %vm366 = vmand %vm288, %vm327
  %vm367 = vmand %vm289, %vm328
  %vm368 = vmand %vm290, %vm329
  %vm369 = vmand %vm291, %vm330
  %vm370 = vmand %vm292, %vm331
  %vm371 = vmand %vm293, %vm332
  %vm372 = vmand %vm294, %vm333
  %vm373 = vmand %vm295, %vm334
  %vm374 = vmand %vm296, %vm335
  %vm375 = vmand %vm297, %vm336
  %vm376 = vmand %vm298, %vm337
  %vm377 = vmand %vm299, %vm338
  %vm378 = vmand %vm300, %vm339
  %vm379 = vmand %vm301, %vm340
  %vm380 = vmand %vm302, %vm341
  %vm381 = vmand %vm303, %vm342
  %vm382 = vmand %vm304, %vm343
  %vm383 = vmand %vm305, %vm344
  %vm384 = vmand %vm306, %vm345
  %vm385 = vmand %vm307, %vm346
  %vm386 = vmand %vm308, %vm347
  %vm387 = vmand %vm309, %vm348
  %vm388 = vmand %vm310, %vm349
  %vm389 = vmand %vm311, %vm350
  %vm390 = vmand %vm312, %vm351
  %vm391 = vmand %vm313, %vm352
  %vm392 = vmand %vm314, %vm353
  %vm393 = vmand %vm315, %vm354
  %vm394 = vmand %vm316, %vm355
  %vm395 = vmand %vm317, %vm356
  %vm396 = vmand %vm318, %vm357
  %vm397 = vmand %vm319, %vm358
  %vm398 = vmand %vm320, %vm359
  %vm399 = vmand %vm321, %vm360
  %vm400 = vcmask 531456
  %v401 = vsel %vm400, %v123, -inf
  %402 = vmax.xlane.f32.xlu0 %v401
  %v403 = vpop.xlane.xlu0 %402
  %v404 = vsel %vm400, %v124, -inf
  %405 = vmax.xlane.f32.xlu0 %v404
  %v406 = vpop.xlane.xlu0 %405
  %v407 = vsel %vm400, %v125, -inf
  %408 = vmax.xlane.f32.xlu0 %v407
  %v409 = vpop.xlane.xlu0 %408
  %v410 = vsel %vm400, %v126, -inf
  %411 = vmax.xlane.f32.xlu0 %v410
  %v412 = vpop.xlane.xlu0 %411
  %v413 = vsel %vm400, %v127, -inf
  %414 = vmax.xlane.f32.xlu0 %v413
  %v415 = vpop.xlane.xlu0 %414
  %v416 = vsel %vm400, %v128, -inf
  %417 = vmax.xlane.f32.xlu0 %v416
  %v418 = vpop.xlane.xlu0 %417
  %v419 = vsel %vm400, %v129, -inf
  %420 = vmax.xlane.f32.xlu0 %v419
  %v421 = vpop.xlane.xlu0 %420
  %v422 = vsel %vm400, %v130, -inf
  %423 = vmax.xlane.f32.xlu0 %v422
  %v424 = vpop.xlane.xlu0 %423
  %v425 = vsel %vm400, %v131, -inf
  %426 = vmax.xlane.f32.xlu0 %v425
  %v427 = vpop.xlane.xlu0 %426
  %v428 = vsel %vm400, %v132, -inf
  %429 = vmax.xlane.f32.xlu0 %v428
  %v430 = vpop.xlane.xlu0 %429
  %v431 = vsel %vm400, %v133, -inf
  %432 = vmax.xlane.f32.xlu0 %v431
  %v433 = vpop.xlane.xlu0 %432
  %v434 = vsel %vm400, %v134, -inf
  %435 = vmax.xlane.f32.xlu0 %v434
  %v436 = vpop.xlane.xlu0 %435
  %v437 = vsel %vm400, %v135, -inf
  %438 = vmax.xlane.f32.xlu0 %v437
  %v439 = vpop.xlane.xlu0 %438
  %v440 = vsel %vm400, %v136, -inf
  %441 = vmax.xlane.f32.xlu0 %v440
  %v442 = vpop.xlane.xlu0 %441
  %v443 = vsel %vm400, %v137, -inf
  %444 = vmax.xlane.f32.xlu0 %v443
  %v445 = vpop.xlane.xlu0 %444
  %v446 = vsel %vm400, %v138, -inf
  %447 = vmax.xlane.f32.xlu0 %v446
  %v448 = vpop.xlane.xlu0 %447
  %v449 = vsel %vm400, %v139, -inf
  %450 = vmax.xlane.f32.xlu0 %v449
  %v451 = vpop.xlane.xlu0 %450
  %v452 = vsel %vm400, %v140, -inf
  %453 = vmax.xlane.f32.xlu0 %v452
  %v454 = vpop.xlane.xlu0 %453
  %v455 = vsel %vm400, %v141, -inf
  %456 = vmax.xlane.f32.xlu0 %v455
  %v457 = vpop.xlane.xlu0 %456
  %v458 = vsel %vm400, %v142, -inf
  %459 = vmax.xlane.f32.xlu0 %v458
  %v460 = vpop.xlane.xlu0 %459
  %v461 = vsel %vm400, %v143, -inf
  %462 = vmax.xlane.f32.xlu0 %v461
  %v463 = vpop.xlane.xlu0 %462
  %v464 = vsel %vm400, %v144, -inf
  %465 = vmax.xlane.f32.xlu0 %v464
  %v466 = vpop.xlane.xlu0 %465
  %v467 = vsel %vm400, %v145, -inf
  %468 = vmax.xlane.f32.xlu0 %v467
  %v469 = vpop.xlane.xlu0 %468
  %v470 = vsel %vm400, %v146, -inf
  %471 = vmax.xlane.f32.xlu0 %v470
  %v472 = vpop.xlane.xlu0 %471
  %v473 = vsel %vm400, %v147, -inf
  %474 = vmax.xlane.f32.xlu0 %v473
  %v475 = vpop.xlane.xlu0 %474
  %v476 = vsel %vm400, %v148, -inf
  %477 = vmax.xlane.f32.xlu0 %v476
  %v478 = vpop.xlane.xlu0 %477
  %v479 = vsel %vm400, %v149, -inf
  %480 = vmax.xlane.f32.xlu0 %v479
  %v481 = vpop.xlane.xlu0 %480
  %v482 = vsel %vm400, %v150, -inf
  %483 = vmax.xlane.f32.xlu0 %v482
  %v484 = vpop.xlane.xlu0 %483
  %v485 = vsel %vm400, %v151, -inf
  %486 = vmax.xlane.f32.xlu0 %v485
  %v487 = vpop.xlane.xlu0 %486
  %v488 = vsel %vm400, %v152, -inf
  %489 = vmax.xlane.f32.xlu0 %v488
  %v490 = vpop.xlane.xlu0 %489
  %v491 = vsel %vm400, %v153, -inf
  %492 = vmax.xlane.f32.xlu0 %v491
  %v493 = vpop.xlane.xlu0 %492
  %v494 = vsel %vm400, %v154, -inf
  %495 = vmax.xlane.f32.xlu0 %v494
  %v496 = vpop.xlane.xlu0 %495
  %v497 = vsel %vm400, %v155, -inf
  %498 = vmax.xlane.f32.xlu0 %v497
  %v499 = vpop.xlane.xlu0 %498
  %v500 = vsel %vm400, %v156, -inf
  %501 = vmax.xlane.f32.xlu0 %v500
  %v502 = vpop.xlane.xlu0 %501
  %v503 = vsel %vm400, %v157, -inf
  %504 = vmax.xlane.f32.xlu0 %v503
  %v505 = vpop.xlane.xlu0 %504
  %v506 = vsel %vm400, %v158, -inf
  %507 = vmax.xlane.f32.xlu0 %v506
  %v508 = vpop.xlane.xlu0 %507
  %v509 = vsel %vm400, %v159, -inf
  %510 = vmax.xlane.f32.xlu0 %v509
  %v511 = vpop.xlane.xlu0 %510
  %v512 = vsel %vm400, %v160, -inf
  %513 = vmax.xlane.f32.xlu0 %v512
  %v514 = vpop.xlane.xlu0 %513
  %v515 = vsel %vm400, %v161, -inf
  %516 = vmax.xlane.f32.xlu0 %v515
  %v517 = vpop.xlane.xlu0 %516
  %v518 = vsub.f32 %v123, %v403
  %v519 = vsub.f32 %v124, %v406
  %v520 = vsub.f32 %v125, %v409
  %v521 = vsub.f32 %v126, %v412
  %v522 = vsub.f32 %v127, %v415
  %v523 = vsub.f32 %v128, %v418
  %v524 = vsub.f32 %v129, %v421
  %v525 = vsub.f32 %v130, %v424
  %v526 = vsub.f32 %v131, %v427
  %v527 = vsub.f32 %v132, %v430
  %v528 = vsub.f32 %v133, %v433
  %v529 = vsub.f32 %v134, %v436
  %v530 = vsub.f32 %v135, %v439
  %v531 = vsub.f32 %v136, %v442
  %v532 = vsub.f32 %v137, %v445
  %v533 = vsub.f32 %v138, %v448
  %v534 = vsub.f32 %v139, %v451
  %v535 = vsub.f32 %v140, %v454
  %v536 = vsub.f32 %v141, %v457
  %v537 = vsub.f32 %v142, %v460
  %v538 = vsub.f32 %v143, %v463
  %v539 = vsub.f32 %v144, %v466
  %v540 = vsub.f32 %v145, %v469
  %v541 = vsub.f32 %v146, %v472
  %v542 = vsub.f32 %v147, %v475
  %v543 = vsub.f32 %v148, %v478
  %v544 = vsub.f32 %v149, %v481
  %v545 = vsub.f32 %v150, %v484
  %v546 = vsub.f32 %v151, %v487
  %v547 = vsub.f32 %v152, %v490
  %v548 = vsub.f32 %v153, %v493
  %v549 = vsub.f32 %v154, %v496
  %v550 = vsub.f32 %v155, %v499
  %v551 = vsub.f32 %v156, %v502
  %v552 = vsub.f32 %v157, %v505
  %v553 = vsub.f32 %v158, %v508
  %v554 = vsub.f32 %v159, %v511
  %v555 = vsub.f32 %v160, %v514
  %v556 = vsub.f32 %v161, %v517
  %v557 = vmul.f32 %v518, 1.442695
  %v558 = vpow.pop %v557
  %v559 = vmul.f32 %v519, 1.442695
  %v560 = vpow.pop %v559
  %v561 = vmul.f32 %v520, 1.442695
  %v562 = vpow.pop %v561
  %v563 = vmul.f32 %v521, 1.442695
  %v564 = vpow.pop %v563
  %v565 = vmul.f32 %v522, 1.442695
  %v566 = vpow.pop %v565
  %v567 = vmul.f32 %v523, 1.442695
  %v568 = vpow.pop %v567
  %v569 = vmul.f32 %v524, 1.442695
  %v570 = vpow.pop %v569
  %v571 = vmul.f32 %v525, 1.442695
  %v572 = vpow.pop %v571
  %v573 = vmul.f32 %v526, 1.442695
  %v574 = vpow.pop %v573
  %v575 = vmul.f32 %v527, 1.442695
  %v576 = vpow.pop %v575
  %v577 = vmul.f32 %v528, 1.442695
  %v578 = vpow.pop %v577
  %v579 = vmul.f32 %v529, 1.442695
  %v580 = vpow.pop %v579
  %v581 = vmul.f32 %v530, 1.442695
  %v582 = vpow.pop %v581
  %v583 = vmul.f32 %v531, 1.442695
  %v584 = vpow.pop %v583
  %v585 = vmul.f32 %v532, 1.442695
  %v586 = vpow.pop %v585
  %v587 = vmul.f32 %v533, 1.442695
  %v588 = vpow.pop %v587
  %v589 = vmul.f32 %v534, 1.442695
  %v590 = vpow.pop %v589
  %v591 = vmul.f32 %v535, 1.442695
  %v592 = vpow.pop %v591
  %v593 = vmul.f32 %v536, 1.442695
  %v594 = vpow.pop %v593
  %v595 = vmul.f32 %v537, 1.442695
  %v596 = vpow.pop %v595
  %v597 = vmul.f32 %v538, 1.442695
  %v598 = vpow.pop %v597
  %v599 = vmul.f32 %v539, 1.442695
  %v600 = vpow.pop %v599
  %v601 = vmul.f32 %v540, 1.442695
  %v602 = vpow.pop %v601
  %v603 = vmul.f32 %v541, 1.442695
  %v604 = vpow.pop %v603
  %v605 = vmul.f32 %v542, 1.442695
  %v606 = vpow.pop %v605
  %v607 = vmul.f32 %v543, 1.442695
  %v608 = vpow.pop %v607
  %v609 = vmul.f32 %v544, 1.442695
  %v610 = vpow.pop %v609
  %v611 = vmul.f32 %v545, 1.442695
  %v612 = vpow.pop %v611
  %v613 = vmul.f32 %v546, 1.442695
  %v614 = vpow.pop %v613
  %v615 = vmul.f32 %v547, 1.442695
  %v616 = vpow.pop %v615
  %v617 = vmul.f32 %v548, 1.442695
  %v618 = vpow.pop %v617
  %v619 = vmul.f32 %v549, 1.442695
  %v620 = vpow.pop %v619
  %v621 = vmul.f32 %v550, 1.442695
  %v622 = vpow.pop %v621
  %v623 = vmul.f32 %v551, 1.442695
  %v624 = vpow.pop %v623
  %v625 = vmul.f32 %v552, 1.442695
  %v626 = vpow.pop %v625
  %v627 = vmul.f32 %v553, 1.442695
  %v628 = vpow.pop %v627
  %v629 = vmul.f32 %v554, 1.442695
  %v630 = vpow.pop %v629
  %v631 = vmul.f32 %v555, 1.442695
  %v632 = vpow.pop %v631
  %v633 = vmul.f32 %v556, 1.442695
  %v634 = vpow.pop %v633
  %v635 = vsel %vm400, %v558, 0.0
  %636 = vadd.xlane.f32.xlu0 %v635
  %v637 = vpop.xlane.xlu0 %636
  %v638 = vsel %vm400, %v560, 0.0
  %639 = vadd.xlane.f32.xlu0 %v638
  %v640 = vpop.xlane.xlu0 %639
  %v641 = vsel %vm400, %v562, 0.0
  %642 = vadd.xlane.f32.xlu0 %v641
  %v643 = vpop.xlane.xlu0 %642
  %v644 = vsel %vm400, %v564, 0.0
  %645 = vadd.xlane.f32.xlu0 %v644
  %v646 = vpop.xlane.xlu0 %645
  %v647 = vsel %vm400, %v566, 0.0
  %648 = vadd.xlane.f32.xlu0 %v647
  %v649 = vpop.xlane.xlu0 %648
  %v650 = vsel %vm400, %v568, 0.0
  %651 = vadd.xlane.f32.xlu0 %v650
  %v652 = vpop.xlane.xlu0 %651
  %v653 = vsel %vm400, %v570, 0.0
  %654 = vadd.xlane.f32.xlu0 %v653
  %v655 = vpop.xlane.xlu0 %654
  %v656 = vsel %vm400, %v572, 0.0
  %657 = vadd.xlane.f32.xlu0 %v656
  %v658 = vpop.xlane.xlu0 %657
  %v659 = vsel %vm400, %v574, 0.0
  %660 = vadd.xlane.f32.xlu0 %v659
  %v661 = vpop.xlane.xlu0 %660
  %v662 = vsel %vm400, %v576, 0.0
  %663 = vadd.xlane.f32.xlu0 %v662
  %v664 = vpop.xlane.xlu0 %663
  %v665 = vsel %vm400, %v578, 0.0
  %666 = vadd.xlane.f32.xlu0 %v665
  %v667 = vpop.xlane.xlu0 %666
  %v668 = vsel %vm400, %v580, 0.0
  %669 = vadd.xlane.f32.xlu0 %v668
  %v670 = vpop.xlane.xlu0 %669
  %v671 = vsel %vm400, %v582, 0.0
  %672 = vadd.xlane.f32.xlu0 %v671
  %v673 = vpop.xlane.xlu0 %672
  %v674 = vsel %vm400, %v584, 0.0
  %675 = vadd.xlane.f32.xlu0 %v674
  %v676 = vpop.xlane.xlu0 %675
  %v677 = vsel %vm400, %v586, 0.0
  %678 = vadd.xlane.f32.xlu0 %v677
  %v679 = vpop.xlane.xlu0 %678
  %v680 = vsel %vm400, %v588, 0.0
  %681 = vadd.xlane.f32.xlu0 %v680
  %v682 = vpop.xlane.xlu0 %681
  %v683 = vsel %vm400, %v590, 0.0
  %684 = vadd.xlane.f32.xlu0 %v683
  %v685 = vpop.xlane.xlu0 %684
  %v686 = vsel %vm400, %v592, 0.0
  %687 = vadd.xlane.f32.xlu0 %v686
  %v688 = vpop.xlane.xlu0 %687
  %v689 = vsel %vm400, %v594, 0.0
  %690 = vadd.xlane.f32.xlu0 %v689
  %v691 = vpop.xlane.xlu0 %690
  %v692 = vsel %vm400, %v596, 0.0
  %693 = vadd.xlane.f32.xlu0 %v692
  %v694 = vpop.xlane.xlu0 %693
  %v695 = vsel %vm400, %v598, 0.0
  %696 = vadd.xlane.f32.xlu0 %v695
  %v697 = vpop.xlane.xlu0 %696
  %v698 = vsel %vm400, %v600, 0.0
  %699 = vadd.xlane.f32.xlu0 %v698
  %v700 = vpop.xlane.xlu0 %699
  %v701 = vsel %vm400, %v602, 0.0
  %702 = vadd.xlane.f32.xlu0 %v701
  %v703 = vpop.xlane.xlu0 %702
  %v704 = vsel %vm400, %v604, 0.0
  %705 = vadd.xlane.f32.xlu0 %v704
  %v706 = vpop.xlane.xlu0 %705
  %v707 = vsel %vm400, %v606, 0.0
  %708 = vadd.xlane.f32.xlu0 %v707
  %v709 = vpop.xlane.xlu0 %708
  %v710 = vsel %vm400, %v608, 0.0
  %711 = vadd.xlane.f32.xlu0 %v710
  %v712 = vpop.xlane.xlu0 %711
  %v713 = vsel %vm400, %v610, 0.0
  %714 = vadd.xlane.f32.xlu0 %v713
  %v715 = vpop.xlane.xlu0 %714
  %v716 = vsel %vm400, %v612, 0.0
  %717 = vadd.xlane.f32.xlu0 %v716
  %v718 = vpop.xlane.xlu0 %717
  %v719 = vsel %vm400, %v614, 0.0
  %720 = vadd.xlane.f32.xlu0 %v719
  %v721 = vpop.xlane.xlu0 %720
  %v722 = vsel %vm400, %v616, 0.0
  %723 = vadd.xlane.f32.xlu0 %v722
  %v724 = vpop.xlane.xlu0 %723
  %v725 = vsel %vm400, %v618, 0.0
  %726 = vadd.xlane.f32.xlu0 %v725
  %v727 = vpop.xlane.xlu0 %726
  %v728 = vsel %vm400, %v620, 0.0
  %729 = vadd.xlane.f32.xlu0 %v728
  %v730 = vpop.xlane.xlu0 %729
  %v731 = vsel %vm400, %v622, 0.0
  %732 = vadd.xlane.f32.xlu0 %v731
  %v733 = vpop.xlane.xlu0 %732
  %v734 = vsel %vm400, %v624, 0.0
  %735 = vadd.xlane.f32.xlu0 %v734
  %v736 = vpop.xlane.xlu0 %735
  %v737 = vsel %vm400, %v626, 0.0
  %738 = vadd.xlane.f32.xlu0 %v737
  %v739 = vpop.xlane.xlu0 %738
  %v740 = vsel %vm400, %v628, 0.0
  %741 = vadd.xlane.f32.xlu0 %v740
  %v742 = vpop.xlane.xlu0 %741
  %v743 = vsel %vm400, %v630, 0.0
  %744 = vadd.xlane.f32.xlu0 %v743
  %v745 = vpop.xlane.xlu0 %744
  %v746 = vsel %vm400, %v632, 0.0
  %747 = vadd.xlane.f32.xlu0 %v746
  %v748 = vpop.xlane.xlu0 %747
  %v749 = vsel %vm400, %v634, 0.0
  %750 = vadd.xlane.f32.xlu0 %v749
  %v751 = vpop.xlane.xlu0 %750
  %v752 = vlog2.pop %v637
  %v753 = vmul.f32 %v752, 0.6931472
  %v754 = vlog2.pop %v640
  %v755 = vmul.f32 %v754, 0.6931472
  %v756 = vlog2.pop %v643
  %v757 = vmul.f32 %v756, 0.6931472
  %v758 = vlog2.pop %v646
  %v759 = vmul.f32 %v758, 0.6931472
  %v760 = vlog2.pop %v649
  %v761 = vmul.f32 %v760, 0.6931472
  %v762 = vlog2.pop %v652
  %v763 = vmul.f32 %v762, 0.6931472
  %v764 = vlog2.pop %v655
  %v765 = vmul.f32 %v764, 0.6931472
  %v766 = vlog2.pop %v658
  %v767 = vmul.f32 %v766, 0.6931472
  %v768 = vlog2.pop %v661
  %v769 = vmul.f32 %v768, 0.6931472
  %v770 = vlog2.pop %v664
  %v771 = vmul.f32 %v770, 0.6931472
  %v772 = vlog2.pop %v667
  %v773 = vmul.f32 %v772, 0.6931472
  %v774 = vlog2.pop %v670
  %v775 = vmul.f32 %v774, 0.6931472
  %v776 = vlog2.pop %v673
  %v777 = vmul.f32 %v776, 0.6931472
  %v778 = vlog2.pop %v676
  %v779 = vmul.f32 %v778, 0.6931472
  %v780 = vlog2.pop %v679
  %v781 = vmul.f32 %v780, 0.6931472
  %v782 = vlog2.pop %v682
  %v783 = vmul.f32 %v782, 0.6931472
  %v784 = vlog2.pop %v685
  %v785 = vmul.f32 %v784, 0.6931472
  %v786 = vlog2.pop %v688
  %v787 = vmul.f32 %v786, 0.6931472
  %v788 = vlog2.pop %v691
  %v789 = vmul.f32 %v788, 0.6931472
  %v790 = vlog2.pop %v694
  %v791 = vmul.f32 %v790, 0.6931472
  %v792 = vlog2.pop %v697
  %v793 = vmul.f32 %v792, 0.6931472
  %v794 = vlog2.pop %v700
  %v795 = vmul.f32 %v794, 0.6931472
  %v796 = vlog2.pop %v703
  %v797 = vmul.f32 %v796, 0.6931472
  %v798 = vlog2.pop %v706
  %v799 = vmul.f32 %v798, 0.6931472
  %v800 = vlog2.pop %v709
  %v801 = vmul.f32 %v800, 0.6931472
  %v802 = vlog2.pop %v712
  %v803 = vmul.f32 %v802, 0.6931472
  %v804 = vlog2.pop %v715
  %v805 = vmul.f32 %v804, 0.6931472
  %v806 = vlog2.pop %v718
  %v807 = vmul.f32 %v806, 0.6931472
  %v808 = vlog2.pop %v721
  %v809 = vmul.f32 %v808, 0.6931472
  %v810 = vlog2.pop %v724
  %v811 = vmul.f32 %v810, 0.6931472
  %v812 = vlog2.pop %v727
  %v813 = vmul.f32 %v812, 0.6931472
  %v814 = vlog2.pop %v730
  %v815 = vmul.f32 %v814, 0.6931472
  %v816 = vlog2.pop %v733
  %v817 = vmul.f32 %v816, 0.6931472
  %v818 = vlog2.pop %v736
  %v819 = vmul.f32 %v818, 0.6931472
  %v820 = vlog2.pop %v739
  %v821 = vmul.f32 %v820, 0.6931472
  %v822 = vlog2.pop %v742
  %v823 = vmul.f32 %v822, 0.6931472
  %v824 = vlog2.pop %v745
  %v825 = vmul.f32 %v824, 0.6931472
  %v826 = vlog2.pop %v748
  %v827 = vmul.f32 %v826, 0.6931472
  %v828 = vlog2.pop %v751
  %v829 = vmul.f32 %v828, 0.6931472
  %v830 = vlaneseq
  %v831 = vand.u32 %v830, 127
  %832 = vset.pattern.permute.xlu0 0
  %833 = vperm.xlu0 %832, %v162
  %v834 = vpop.permute.xlu0 %833
  %835 = vset.pattern.permute.xlu0 0
  %836 = vperm.xlu0 %835, %v163
  %v837 = vpop.permute.xlu0 %836
  %838 = vset.pattern.permute.xlu0 0
  %839 = vperm.xlu0 %838, %v164
  %v840 = vpop.permute.xlu0 %839
  %841 = vset.pattern.permute.xlu0 0
  %842 = vperm.xlu0 %841, %v165
  %v843 = vpop.permute.xlu0 %842
  %844 = vset.pattern.permute.xlu0 0
  %845 = vperm.xlu0 %844, %v166
  %v846 = vpop.permute.xlu0 %845
  %847 = vset.pattern.permute.xlu0 0
  %848 = vperm.xlu0 %847, %v167
  %v849 = vpop.permute.xlu0 %848
  %850 = vset.pattern.permute.xlu0 0
  %851 = vperm.xlu0 %850, %v168
  %v852 = vpop.permute.xlu0 %851
  %853 = vset.pattern.permute.xlu0 0
  %854 = vperm.xlu0 %853, %v169
  %v855 = vpop.permute.xlu0 %854
  %856 = vset.pattern.permute.xlu0 0
  %857 = vperm.xlu0 %856, %v170
  %v858 = vpop.permute.xlu0 %857
  %859 = vset.pattern.permute.xlu0 0
  %860 = vperm.xlu0 %859, %v171
  %v861 = vpop.permute.xlu0 %860
  %862 = vset.pattern.permute.xlu0 0
  %863 = vperm.xlu0 %862, %v172
  %v864 = vpop.permute.xlu0 %863
  %865 = vset.pattern.permute.xlu0 0
  %866 = vperm.xlu0 %865, %v173
  %v867 = vpop.permute.xlu0 %866
  %868 = vset.pattern.permute.xlu0 0
  %869 = vperm.xlu0 %868, %v174
  %v870 = vpop.permute.xlu0 %869
  %871 = vset.pattern.permute.xlu0 0
  %872 = vperm.xlu0 %871, %v175
  %v873 = vpop.permute.xlu0 %872
  %874 = vset.pattern.permute.xlu0 0
  %875 = vperm.xlu0 %874, %v176
  %v876 = vpop.permute.xlu0 %875
  %877 = vset.pattern.permute.xlu0 0
  %878 = vperm.xlu0 %877, %v177
  %v879 = vpop.permute.xlu0 %878
  %880 = vset.pattern.permute.xlu0 0
  %881 = vperm.xlu0 %880, %v178
  %v882 = vpop.permute.xlu0 %881
  %883 = vset.pattern.permute.xlu0 0
  %884 = vperm.xlu0 %883, %v179
  %v885 = vpop.permute.xlu0 %884
  %886 = vset.pattern.permute.xlu0 0
  %887 = vperm.xlu0 %886, %v180
  %v888 = vpop.permute.xlu0 %887
  %889 = vset.pattern.permute.xlu0 0
  %890 = vperm.xlu0 %889, %v181
  %v891 = vpop.permute.xlu0 %890
  %892 = vset.pattern.permute.xlu0 0
  %893 = vperm.xlu0 %892, %v182
  %v894 = vpop.permute.xlu0 %893
  %895 = vset.pattern.permute.xlu0 0
  %896 = vperm.xlu0 %895, %v183
  %v897 = vpop.permute.xlu0 %896
  %898 = vset.pattern.permute.xlu0 0
  %899 = vperm.xlu0 %898, %v184
  %v900 = vpop.permute.xlu0 %899
  %901 = vset.pattern.permute.xlu0 0
  %902 = vperm.xlu0 %901, %v185
  %v903 = vpop.permute.xlu0 %902
  %904 = vset.pattern.permute.xlu0 0
  %905 = vperm.xlu0 %904, %v186
  %v906 = vpop.permute.xlu0 %905
  %907 = vset.pattern.permute.xlu0 0
  %908 = vperm.xlu0 %907, %v187
  %v909 = vpop.permute.xlu0 %908
  %910 = vset.pattern.permute.xlu0 0
  %911 = vperm.xlu0 %910, %v188
  %v912 = vpop.permute.xlu0 %911
  %913 = vset.pattern.permute.xlu0 0
  %914 = vperm.xlu0 %913, %v189
  %v915 = vpop.permute.xlu0 %914
  %916 = vset.pattern.permute.xlu0 0
  %917 = vperm.xlu0 %916, %v190
  %v918 = vpop.permute.xlu0 %917
  %919 = vset.pattern.permute.xlu0 0
  %920 = vperm.xlu0 %919, %v191
  %v921 = vpop.permute.xlu0 %920
  %922 = vset.pattern.permute.xlu0 0
  %923 = vperm.xlu0 %922, %v192
  %v924 = vpop.permute.xlu0 %923
  %925 = vset.pattern.permute.xlu0 0
  %926 = vperm.xlu0 %925, %v193
  %v927 = vpop.permute.xlu0 %926
  %928 = vset.pattern.permute.xlu0 0
  %929 = vperm.xlu0 %928, %v194
  %v930 = vpop.permute.xlu0 %929
  %931 = vset.pattern.permute.xlu0 0
  %932 = vperm.xlu0 %931, %v195
  %v933 = vpop.permute.xlu0 %932
  %934 = vset.pattern.permute.xlu0 0
  %935 = vperm.xlu0 %934, %v196
  %v936 = vpop.permute.xlu0 %935
  %937 = vset.pattern.permute.xlu0 0
  %938 = vperm.xlu0 %937, %v197
  %v939 = vpop.permute.xlu0 %938
  %940 = vset.pattern.permute.xlu0 0
  %941 = vperm.xlu0 %940, %v198
  %v942 = vpop.permute.xlu0 %941
  %943 = vset.pattern.permute.xlu0 0
  %944 = vperm.xlu0 %943, %v199
  %v945 = vpop.permute.xlu0 %944
  %946 = vset.pattern.permute.xlu0 0
  %947 = vperm.xlu0 %946, %v200
  %v948 = vpop.permute.xlu0 %947
  %vm949 = vcmp.eq.s32.totalorder %v831, %v834
  %vm950 = vcmp.eq.s32.totalorder %v831, %v837
  %vm951 = vcmp.eq.s32.totalorder %v831, %v840
  %vm952 = vcmp.eq.s32.totalorder %v831, %v843
  %vm953 = vcmp.eq.s32.totalorder %v831, %v846
  %vm954 = vcmp.eq.s32.totalorder %v831, %v849
  %vm955 = vcmp.eq.s32.totalorder %v831, %v852
  %vm956 = vcmp.eq.s32.totalorder %v831, %v855
  %vm957 = vcmp.eq.s32.totalorder %v831, %v858
  %vm958 = vcmp.eq.s32.totalorder %v831, %v861
  %vm959 = vcmp.eq.s32.totalorder %v831, %v864
  %vm960 = vcmp.eq.s32.totalorder %v831, %v867
  %vm961 = vcmp.eq.s32.totalorder %v831, %v870
  %vm962 = vcmp.eq.s32.totalorder %v831, %v873
  %vm963 = vcmp.eq.s32.totalorder %v831, %v876
  %vm964 = vcmp.eq.s32.totalorder %v831, %v879
  %vm965 = vcmp.eq.s32.totalorder %v831, %v882
  %vm966 = vcmp.eq.s32.totalorder %v831, %v885
  %vm967 = vcmp.eq.s32.totalorder %v831, %v888
  %vm968 = vcmp.eq.s32.totalorder %v831, %v891
  %vm969 = vcmp.eq.s32.totalorder %v831, %v894
  %vm970 = vcmp.eq.s32.totalorder %v831, %v897
  %vm971 = vcmp.eq.s32.totalorder %v831, %v900
  %vm972 = vcmp.eq.s32.totalorder %v831, %v903
  %vm973 = vcmp.eq.s32.totalorder %v831, %v906
  %vm974 = vcmp.eq.s32.totalorder %v831, %v909
  %vm975 = vcmp.eq.s32.totalorder %v831, %v912
  %vm976 = vcmp.eq.s32.totalorder %v831, %v915
  %vm977 = vcmp.eq.s32.totalorder %v831, %v918
  %vm978 = vcmp.eq.s32.totalorder %v831, %v921
  %vm979 = vcmp.eq.s32.totalorder %v831, %v924
  %vm980 = vcmp.eq.s32.totalorder %v831, %v927
  %vm981 = vcmp.eq.s32.totalorder %v831, %v930
  %vm982 = vcmp.eq.s32.totalorder %v831, %v933
  %vm983 = vcmp.eq.s32.totalorder %v831, %v936
  %vm984 = vcmp.eq.s32.totalorder %v831, %v939
  %vm985 = vcmp.eq.s32.totalorder %v831, %v942
  %vm986 = vcmp.eq.s32.totalorder %v831, %v945
  %vm987 = vcmp.eq.s32.totalorder %v831, %v948
  %v988 = vsel %vm949, %v518, 0.0
  %v989 = vsel %vm950, %v519, 0.0
  %v990 = vsel %vm951, %v520, 0.0
  %v991 = vsel %vm952, %v521, 0.0
  %v992 = vsel %vm953, %v522, 0.0
  %v993 = vsel %vm954, %v523, 0.0
  %v994 = vsel %vm955, %v524, 0.0
  %v995 = vsel %vm956, %v525, 0.0
  %v996 = vsel %vm957, %v526, 0.0
  %v997 = vsel %vm958, %v527, 0.0
  %v998 = vsel %vm959, %v528, 0.0
  %v999 = vsel %vm960, %v529, 0.0
  %v1000 = vsel %vm961, %v530, 0.0
  %v1001 = vsel %vm962, %v531, 0.0
  %v1002 = vsel %vm963, %v532, 0.0
  %v1003 = vsel %vm964, %v533, 0.0
  %v1004 = vsel %vm965, %v534, 0.0
  %v1005 = vsel %vm966, %v535, 0.0
  %v1006 = vsel %vm967, %v536, 0.0
  %v1007 = vsel %vm968, %v537, 0.0
  %v1008 = vsel %vm969, %v538, 0.0
  %v1009 = vsel %vm970, %v539, 0.0
  %v1010 = vsel %vm971, %v540, 0.0
  %v1011 = vsel %vm972, %v541, 0.0
  %v1012 = vsel %vm973, %v542, 0.0
  %v1013 = vsel %vm974, %v543, 0.0
  %v1014 = vsel %vm975, %v544, 0.0
  %v1015 = vsel %vm976, %v545, 0.0
  %v1016 = vsel %vm977, %v546, 0.0
  %v1017 = vsel %vm978, %v547, 0.0
  %v1018 = vsel %vm979, %v548, 0.0
  %v1019 = vsel %vm980, %v549, 0.0
  %v1020 = vsel %vm981, %v550, 0.0
  %v1021 = vsel %vm982, %v551, 0.0
  %v1022 = vsel %vm983, %v552, 0.0
  %v1023 = vsel %vm984, %v553, 0.0
  %v1024 = vsel %vm985, %v554, 0.0
  %v1025 = vsel %vm986, %v555, 0.0
  %v1026 = vsel %vm987, %v556, 0.0
  %v1027 = vsel %vm400, %v988, 0.0
  %1028 = vadd.xlane.f32.xlu0 %v1027
  %v1029 = vpop.xlane.xlu0 %1028
  %v1030 = vsel %vm400, %v989, 0.0
  %1031 = vadd.xlane.f32.xlu0 %v1030
  %v1032 = vpop.xlane.xlu0 %1031
  %v1033 = vsel %vm400, %v990, 0.0
  %1034 = vadd.xlane.f32.xlu0 %v1033
  %v1035 = vpop.xlane.xlu0 %1034
  %v1036 = vsel %vm400, %v991, 0.0
  %1037 = vadd.xlane.f32.xlu0 %v1036
  %v1038 = vpop.xlane.xlu0 %1037
  %v1039 = vsel %vm400, %v992, 0.0
  %1040 = vadd.xlane.f32.xlu0 %v1039
  %v1041 = vpop.xlane.xlu0 %1040
  %v1042 = vsel %vm400, %v993, 0.0
  %1043 = vadd.xlane.f32.xlu0 %v1042
  %v1044 = vpop.xlane.xlu0 %1043
  %v1045 = vsel %vm400, %v994, 0.0
  %1046 = vadd.xlane.f32.xlu0 %v1045
  %v1047 = vpop.xlane.xlu0 %1046
  %v1048 = vsel %vm400, %v995, 0.0
  %1049 = vadd.xlane.f32.xlu0 %v1048
  %v1050 = vpop.xlane.xlu0 %1049
  %v1051 = vsel %vm400, %v996, 0.0
  %1052 = vadd.xlane.f32.xlu0 %v1051
  %v1053 = vpop.xlane.xlu0 %1052
  %v1054 = vsel %vm400, %v997, 0.0
  %1055 = vadd.xlane.f32.xlu0 %v1054
  %v1056 = vpop.xlane.xlu0 %1055
  %v1057 = vsel %vm400, %v998, 0.0
  %1058 = vadd.xlane.f32.xlu0 %v1057
  %v1059 = vpop.xlane.xlu0 %1058
  %v1060 = vsel %vm400, %v999, 0.0
  %1061 = vadd.xlane.f32.xlu0 %v1060
  %v1062 = vpop.xlane.xlu0 %1061
  %v1063 = vsel %vm400, %v1000, 0.0
  %1064 = vadd.xlane.f32.xlu0 %v1063
  %v1065 = vpop.xlane.xlu0 %1064
  %v1066 = vsel %vm400, %v1001, 0.0
  %1067 = vadd.xlane.f32.xlu0 %v1066
  %v1068 = vpop.xlane.xlu0 %1067
  %v1069 = vsel %vm400, %v1002, 0.0
  %1070 = vadd.xlane.f32.xlu0 %v1069
  %v1071 = vpop.xlane.xlu0 %1070
  %v1072 = vsel %vm400, %v1003, 0.0
  %1073 = vadd.xlane.f32.xlu0 %v1072
  %v1074 = vpop.xlane.xlu0 %1073
  %v1075 = vsel %vm400, %v1004, 0.0
  %1076 = vadd.xlane.f32.xlu0 %v1075
  %v1077 = vpop.xlane.xlu0 %1076
  %v1078 = vsel %vm400, %v1005, 0.0
  %1079 = vadd.xlane.f32.xlu0 %v1078
  %v1080 = vpop.xlane.xlu0 %1079
  %v1081 = vsel %vm400, %v1006, 0.0
  %1082 = vadd.xlane.f32.xlu0 %v1081
  %v1083 = vpop.xlane.xlu0 %1082
  %v1084 = vsel %vm400, %v1007, 0.0
  %1085 = vadd.xlane.f32.xlu0 %v1084
  %v1086 = vpop.xlane.xlu0 %1085
  %v1087 = vsel %vm400, %v1008, 0.0
  %1088 = vadd.xlane.f32.xlu0 %v1087
  %v1089 = vpop.xlane.xlu0 %1088
  %v1090 = vsel %vm400, %v1009, 0.0
  %1091 = vadd.xlane.f32.xlu0 %v1090
  %v1092 = vpop.xlane.xlu0 %1091
  %v1093 = vsel %vm400, %v1010, 0.0
  %1094 = vadd.xlane.f32.xlu0 %v1093
  %v1095 = vpop.xlane.xlu0 %1094
  %v1096 = vsel %vm400, %v1011, 0.0
  %1097 = vadd.xlane.f32.xlu0 %v1096
  %v1098 = vpop.xlane.xlu0 %1097
  %v1099 = vsel %vm400, %v1012, 0.0
  %1100 = vadd.xlane.f32.xlu0 %v1099
  %v1101 = vpop.xlane.xlu0 %1100
  %v1102 = vsel %vm400, %v1013, 0.0
  %1103 = vadd.xlane.f32.xlu0 %v1102
  %v1104 = vpop.xlane.xlu0 %1103
  %v1105 = vsel %vm400, %v1014, 0.0
  %1106 = vadd.xlane.f32.xlu0 %v1105
  %v1107 = vpop.xlane.xlu0 %1106
  %v1108 = vsel %vm400, %v1015, 0.0
  %1109 = vadd.xlane.f32.xlu0 %v1108
  %v1110 = vpop.xlane.xlu0 %1109
  %v1111 = vsel %vm400, %v1016, 0.0
  %1112 = vadd.xlane.f32.xlu0 %v1111
  %v1113 = vpop.xlane.xlu0 %1112
  %v1114 = vsel %vm400, %v1017, 0.0
  %1115 = vadd.xlane.f32.xlu0 %v1114
  %v1116 = vpop.xlane.xlu0 %1115
  %v1117 = vsel %vm400, %v1018, 0.0
  %1118 = vadd.xlane.f32.xlu0 %v1117
  %v1119 = vpop.xlane.xlu0 %1118
  %v1120 = vsel %vm400, %v1019, 0.0
  %1121 = vadd.xlane.f32.xlu0 %v1120
  %v1122 = vpop.xlane.xlu0 %1121
  %v1123 = vsel %vm400, %v1020, 0.0
  %1124 = vadd.xlane.f32.xlu0 %v1123
  %v1125 = vpop.xlane.xlu0 %1124
  %v1126 = vsel %vm400, %v1021, 0.0
  %1127 = vadd.xlane.f32.xlu0 %v1126
  %v1128 = vpop.xlane.xlu0 %1127
  %v1129 = vsel %vm400, %v1022, 0.0
  %1130 = vadd.xlane.f32.xlu0 %v1129
  %v1131 = vpop.xlane.xlu0 %1130
  %v1132 = vsel %vm400, %v1023, 0.0
  %1133 = vadd.xlane.f32.xlu0 %v1132
  %v1134 = vpop.xlane.xlu0 %1133
  %v1135 = vsel %vm400, %v1024, 0.0
  %1136 = vadd.xlane.f32.xlu0 %v1135
  %v1137 = vpop.xlane.xlu0 %1136
  %v1138 = vsel %vm400, %v1025, 0.0
  %1139 = vadd.xlane.f32.xlu0 %v1138
  %v1140 = vpop.xlane.xlu0 %1139
  %v1141 = vsel %vm400, %v1026, 0.0
  %1142 = vadd.xlane.f32.xlu0 %v1141
  %v1143 = vpop.xlane.xlu0 %1142
  %v1144 = vsub.f32 %v753, %v1029
  %v1145 = vsub.f32 %v755, %v1032
  %v1146 = vsub.f32 %v757, %v1035
  %v1147 = vsub.f32 %v759, %v1038
  %v1148 = vsub.f32 %v761, %v1041
  %v1149 = vsub.f32 %v763, %v1044
  %v1150 = vsub.f32 %v765, %v1047
  %v1151 = vsub.f32 %v767, %v1050
  %v1152 = vsub.f32 %v769, %v1053
  %v1153 = vsub.f32 %v771, %v1056
  %v1154 = vsub.f32 %v773, %v1059
  %v1155 = vsub.f32 %v775, %v1062
  %v1156 = vsub.f32 %v777, %v1065
  %v1157 = vsub.f32 %v779, %v1068
  %v1158 = vsub.f32 %v781, %v1071
  %v1159 = vsub.f32 %v783, %v1074
  %v1160 = vsub.f32 %v785, %v1077
  %v1161 = vsub.f32 %v787, %v1080
  %v1162 = vsub.f32 %v789, %v1083
  %v1163 = vsub.f32 %v791, %v1086
  %v1164 = vsub.f32 %v793, %v1089
  %v1165 = vsub.f32 %v795, %v1092
  %v1166 = vsub.f32 %v797, %v1095
  %v1167 = vsub.f32 %v799, %v1098
  %v1168 = vsub.f32 %v801, %v1101
  %v1169 = vsub.f32 %v803, %v1104
  %v1170 = vsub.f32 %v805, %v1107
  %v1171 = vsub.f32 %v807, %v1110
  %v1172 = vsub.f32 %v809, %v1113
  %v1173 = vsub.f32 %v811, %v1116
  %v1174 = vsub.f32 %v813, %v1119
  %v1175 = vsub.f32 %v815, %v1122
  %v1176 = vsub.f32 %v817, %v1125
  %v1177 = vsub.f32 %v819, %v1128
  %v1178 = vsub.f32 %v821, %v1131
  %v1179 = vsub.f32 %v823, %v1134
  %v1180 = vsub.f32 %v825, %v1137
  %v1181 = vsub.f32 %v827, %v1140
  %v1182 = vsub.f32 %v829, %v1143
  %v1183 = vsel %vm361, %v1144, 0.0
  %v1184 = vsel %vm362, %v1145, 0.0
  %v1185 = vsel %vm363, %v1146, 0.0
  %v1186 = vsel %vm364, %v1147, 0.0
  %v1187 = vsel %vm365, %v1148, 0.0
  %v1188 = vsel %vm366, %v1149, 0.0
  %v1189 = vsel %vm367, %v1150, 0.0
  %v1190 = vsel %vm368, %v1151, 0.0
  %v1191 = vsel %vm369, %v1152, 0.0
  %v1192 = vsel %vm370, %v1153, 0.0
  %v1193 = vsel %vm371, %v1154, 0.0
  %v1194 = vsel %vm372, %v1155, 0.0
  %v1195 = vsel %vm373, %v1156, 0.0
  %v1196 = vsel %vm374, %v1157, 0.0
  %v1197 = vsel %vm375, %v1158, 0.0
  %v1198 = vsel %vm376, %v1159, 0.0
  %v1199 = vsel %vm377, %v1160, 0.0
  %v1200 = vsel %vm378, %v1161, 0.0
  %v1201 = vsel %vm379, %v1162, 0.0
  %v1202 = vsel %vm380, %v1163, 0.0
  %v1203 = vsel %vm381, %v1164, 0.0
  %v1204 = vsel %vm382, %v1165, 0.0
  %v1205 = vsel %vm383, %v1166, 0.0
  %v1206 = vsel %vm384, %v1167, 0.0
  %v1207 = vsel %vm385, %v1168, 0.0
  %v1208 = vsel %vm386, %v1169, 0.0
  %v1209 = vsel %vm387, %v1170, 0.0
  %v1210 = vsel %vm388, %v1171, 0.0
  %v1211 = vsel %vm389, %v1172, 0.0
  %v1212 = vsel %vm390, %v1173, 0.0
  %v1213 = vsel %vm391, %v1174, 0.0
  %v1214 = vsel %vm392, %v1175, 0.0
  %v1215 = vsel %vm393, %v1176, 0.0
  %v1216 = vsel %vm394, %v1177, 0.0
  %v1217 = vsel %vm395, %v1178, 0.0
  %v1218 = vsel %vm396, %v1179, 0.0
  %v1219 = vsel %vm397, %v1180, 0.0
  %v1220 = vsel %vm398, %v1181, 0.0
  %v1221 = vsel %vm399, %v1182, 0.0
  %v1222 = vsel %vm361, 1, 0
  %v1223 = vsel %vm362, 1, 0
  %v1224 = vsel %vm363, 1, 0
  %v1225 = vsel %vm364, 1, 0
  %v1226 = vsel %vm365, 1, 0
  %v1227 = vsel %vm366, 1, 0
  %v1228 = vsel %vm367, 1, 0
  %v1229 = vsel %vm368, 1, 0
  %v1230 = vsel %vm369, 1, 0
  %v1231 = vsel %vm370, 1, 0
  %v1232 = vsel %vm371, 1, 0
  %v1233 = vsel %vm372, 1, 0
  %v1234 = vsel %vm373, 1, 0
  %v1235 = vsel %vm374, 1, 0
  %v1236 = vsel %vm375, 1, 0
  %v1237 = vsel %vm376, 1, 0
  %v1238 = vsel %vm377, 1, 0
  %v1239 = vsel %vm378, 1, 0
  %v1240 = vsel %vm379, 1, 0
  %v1241 = vsel %vm380, 1, 0
  %v1242 = vsel %vm381, 1, 0
  %v1243 = vsel %vm382, 1, 0
  %v1244 = vsel %vm383, 1, 0
  %v1245 = vsel %vm384, 1, 0
  %v1246 = vsel %vm385, 1, 0
  %v1247 = vsel %vm386, 1, 0
  %v1248 = vsel %vm387, 1, 0
  %v1249 = vsel %vm388, 1, 0
  %v1250 = vsel %vm389, 1, 0
  %v1251 = vsel %vm390, 1, 0
  %v1252 = vsel %vm391, 1, 0
  %v1253 = vsel %vm392, 1, 0
  %v1254 = vsel %vm393, 1, 0
  %v1255 = vsel %vm394, 1, 0
  %v1256 = vsel %vm395, 1, 0
  %v1257 = vsel %vm396, 1, 0
  %v1258 = vsel %vm397, 1, 0
  %v1259 = vsel %vm398, 1, 0
  %v1260 = vsel %vm399, 1, 0
  %v1261 = vcvt.s32.f32 %v1222
  %v1262 = vcvt.s32.f32 %v1223
  %v1263 = vcvt.s32.f32 %v1224
  %v1264 = vcvt.s32.f32 %v1225
  %v1265 = vcvt.s32.f32 %v1226
  %v1266 = vcvt.s32.f32 %v1227
  %v1267 = vcvt.s32.f32 %v1228
  %v1268 = vcvt.s32.f32 %v1229
  %v1269 = vcvt.s32.f32 %v1230
  %v1270 = vcvt.s32.f32 %v1231
  %v1271 = vcvt.s32.f32 %v1232
  %v1272 = vcvt.s32.f32 %v1233
  %v1273 = vcvt.s32.f32 %v1234
  %v1274 = vcvt.s32.f32 %v1235
  %v1275 = vcvt.s32.f32 %v1236
  %v1276 = vcvt.s32.f32 %v1237
  %v1277 = vcvt.s32.f32 %v1238
  %v1278 = vcvt.s32.f32 %v1239
  %v1279 = vcvt.s32.f32 %v1240
  %v1280 = vcvt.s32.f32 %v1241
  %v1281 = vcvt.s32.f32 %v1242
  %v1282 = vcvt.s32.f32 %v1243
  %v1283 = vcvt.s32.f32 %v1244
  %v1284 = vcvt.s32.f32 %v1245
  %v1285 = vcvt.s32.f32 %v1246
  %v1286 = vcvt.s32.f32 %v1247
  %v1287 = vcvt.s32.f32 %v1248
  %v1288 = vcvt.s32.f32 %v1249
  %v1289 = vcvt.s32.f32 %v1250
  %v1290 = vcvt.s32.f32 %v1251
  %v1291 = vcvt.s32.f32 %v1252
  %v1292 = vcvt.s32.f32 %v1253
  %v1293 = vcvt.s32.f32 %v1254
  %v1294 = vcvt.s32.f32 %v1255
  %v1295 = vcvt.s32.f32 %v1256
  %v1296 = vcvt.s32.f32 %v1257
  %v1297 = vcvt.s32.f32 %v1258
  %v1298 = vcvt.s32.f32 %v1259
  %v1299 = vcvt.s32.f32 %v1260
  %v1300 = vld [vmem:[%s2] sm:$0xff]
  %vm1301 = vcmask 7168
  %v1302 = vsel %vm1301, %v1183, 0.0
  %v1303 = vsel %vm1301, %v1184, 0.0
  %v1304 = vadd.f32 %v1302, %v1303
  %v1305 = vsel %vm1301, %v1185, 0.0
  %v1306 = vadd.f32 %v1304, %v1305
  %v1307 = vsel %vm1301, %v1186, 0.0
  %v1308 = vadd.f32 %v1306, %v1307
  %v1309 = vsel %vm1301, %v1187, 0.0
  %v1310 = vadd.f32 %v1308, %v1309
  %v1311 = vsel %vm1301, %v1188, 0.0
  %v1312 = vadd.f32 %v1310, %v1311
  %v1313 = vsel %vm1301, %v1189, 0.0
  %v1314 = vadd.f32 %v1312, %v1313
  %v1315 = vsel %vm1301, %v1190, 0.0
  %v1316 = vadd.f32 %v1314, %v1315
  %v1317 = vsel %vm1301, %v1191, 0.0
  %v1318 = vadd.f32 %v1316, %v1317
  %v1319 = vsel %vm1301, %v1192, 0.0
  %v1320 = vadd.f32 %v1318, %v1319
  %v1321 = vsel %vm1301, %v1193, 0.0
  %v1322 = vadd.f32 %v1320, %v1321
  %v1323 = vsel %vm1301, %v1194, 0.0
  %v1324 = vadd.f32 %v1322, %v1323
  %v1325 = vsel %vm1301, %v1195, 0.0
  %v1326 = vadd.f32 %v1324, %v1325
  %v1327 = vsel %vm1301, %v1196, 0.0
  %v1328 = vadd.f32 %v1326, %v1327
  %v1329 = vsel %vm1301, %v1197, 0.0
  %v1330 = vadd.f32 %v1328, %v1329
  %v1331 = vsel %vm1301, %v1198, 0.0
  %v1332 = vadd.f32 %v1330, %v1331
  %v1333 = vsel %vm1301, %v1199, 0.0
  %v1334 = vadd.f32 %v1332, %v1333
  %v1335 = vsel %vm1301, %v1200, 0.0
  %v1336 = vadd.f32 %v1334, %v1335
  %v1337 = vsel %vm1301, %v1201, 0.0
  %v1338 = vadd.f32 %v1336, %v1337
  %v1339 = vsel %vm1301, %v1202, 0.0
  %v1340 = vadd.f32 %v1338, %v1339
  %v1341 = vsel %vm1301, %v1203, 0.0
  %v1342 = vadd.f32 %v1340, %v1341
  %v1343 = vsel %vm1301, %v1204, 0.0
  %v1344 = vadd.f32 %v1342, %v1343
  %v1345 = vsel %vm1301, %v1205, 0.0
  %v1346 = vadd.f32 %v1344, %v1345
  %v1347 = vsel %vm1301, %v1206, 0.0
  %v1348 = vadd.f32 %v1346, %v1347
  %v1349 = vsel %vm1301, %v1207, 0.0
  %v1350 = vadd.f32 %v1348, %v1349
  %v1351 = vsel %vm1301, %v1208, 0.0
  %v1352 = vadd.f32 %v1350, %v1351
  %v1353 = vsel %vm1301, %v1209, 0.0
  %v1354 = vadd.f32 %v1352, %v1353
  %v1355 = vsel %vm1301, %v1210, 0.0
  %v1356 = vadd.f32 %v1354, %v1355
  %v1357 = vsel %vm1301, %v1211, 0.0
  %v1358 = vadd.f32 %v1356, %v1357
  %v1359 = vsel %vm1301, %v1212, 0.0
  %v1360 = vadd.f32 %v1358, %v1359
  %v1361 = vsel %vm1301, %v1213, 0.0
  %v1362 = vadd.f32 %v1360, %v1361
  %v1363 = vsel %vm1301, %v1214, 0.0
  %v1364 = vadd.f32 %v1362, %v1363
  %v1365 = vsel %vm1301, %v1215, 0.0
  %v1366 = vadd.f32 %v1364, %v1365
  %v1367 = vsel %vm1301, %v1216, 0.0
  %v1368 = vadd.f32 %v1366, %v1367
  %v1369 = vsel %vm1301, %v1217, 0.0
  %v1370 = vadd.f32 %v1368, %v1369
  %v1371 = vsel %vm1301, %v1218, 0.0
  %v1372 = vadd.f32 %v1370, %v1371
  %v1373 = vsel %vm1301, %v1219, 0.0
  %v1374 = vadd.f32 %v1372, %v1373
  %v1375 = vsel %vm1301, %v1220, 0.0
  %v1376 = vadd.f32 %v1374, %v1375
  %v1377 = vsel %vm1301, %v1221, 0.0
  %v1378 = vadd.f32 %v1376, %v1377
  %v1379 = vadd.f32 %v1300, %v1378
  %1380 = vst.msk [vmem:[%s2] sm:$0xff] %vm1301, %v1379
  %v1381 = vld [vmem:[%s3] sm:$0xff]
  %v1382 = vsel %vm1301, %v1261, 0.0
  %v1383 = vsel %vm1301, %v1262, 0.0
  %v1384 = vadd.f32 %v1382, %v1383
  %v1385 = vsel %vm1301, %v1263, 0.0
  %v1386 = vadd.f32 %v1384, %v1385
  %v1387 = vsel %vm1301, %v1264, 0.0
  %v1388 = vadd.f32 %v1386, %v1387
  %v1389 = vsel %vm1301, %v1265, 0.0
  %v1390 = vadd.f32 %v1388, %v1389
  %v1391 = vsel %vm1301, %v1266, 0.0
  %v1392 = vadd.f32 %v1390, %v1391
  %v1393 = vsel %vm1301, %v1267, 0.0
  %v1394 = vadd.f32 %v1392, %v1393
  %v1395 = vsel %vm1301, %v1268, 0.0
  %v1396 = vadd.f32 %v1394, %v1395
  %v1397 = vsel %vm1301, %v1269, 0.0
  %v1398 = vadd.f32 %v1396, %v1397
  %v1399 = vsel %vm1301, %v1270, 0.0
  %v1400 = vadd.f32 %v1398, %v1399
  %v1401 = vsel %vm1301, %v1271, 0.0
  %v1402 = vadd.f32 %v1400, %v1401
  %v1403 = vsel %vm1301, %v1272, 0.0
  %v1404 = vadd.f32 %v1402, %v1403
  %v1405 = vsel %vm1301, %v1273, 0.0
  %v1406 = vadd.f32 %v1404, %v1405
  %v1407 = vsel %vm1301, %v1274, 0.0
  %v1408 = vadd.f32 %v1406, %v1407
  %v1409 = vsel %vm1301, %v1275, 0.0
  %v1410 = vadd.f32 %v1408, %v1409
  %v1411 = vsel %vm1301, %v1276, 0.0
  %v1412 = vadd.f32 %v1410, %v1411
  %v1413 = vsel %vm1301, %v1277, 0.0
  %v1414 = vadd.f32 %v1412, %v1413
  %v1415 = vsel %vm1301, %v1278, 0.0
  %v1416 = vadd.f32 %v1414, %v1415
  %v1417 = vsel %vm1301, %v1279, 0.0
  %v1418 = vadd.f32 %v1416, %v1417
  %v1419 = vsel %vm1301, %v1280, 0.0
  %v1420 = vadd.f32 %v1418, %v1419
  %v1421 = vsel %vm1301, %v1281, 0.0
  %v1422 = vadd.f32 %v1420, %v1421
  %v1423 = vsel %vm1301, %v1282, 0.0
  %v1424 = vadd.f32 %v1422, %v1423
  %v1425 = vsel %vm1301, %v1283, 0.0
  %v1426 = vadd.f32 %v1424, %v1425
  %v1427 = vsel %vm1301, %v1284, 0.0
  %v1428 = vadd.f32 %v1426, %v1427
  %v1429 = vsel %vm1301, %v1285, 0.0
  %v1430 = vadd.f32 %v1428, %v1429
  %v1431 = vsel %vm1301, %v1286, 0.0
  %v1432 = vadd.f32 %v1430, %v1431
  %v1433 = vsel %vm1301, %v1287, 0.0
  %v1434 = vadd.f32 %v1432, %v1433
  %v1435 = vsel %vm1301, %v1288, 0.0
  %v1436 = vadd.f32 %v1434, %v1435
  %v1437 = vsel %vm1301, %v1289, 0.0
  %v1438 = vadd.f32 %v1436, %v1437
  %v1439 = vsel %vm1301, %v1290, 0.0
  %v1440 = vadd.f32 %v1438, %v1439
  %v1441 = vsel %vm1301, %v1291, 0.0
  %v1442 = vadd.f32 %v1440, %v1441
  %v1443 = vsel %vm1301, %v1292, 0.0
  %v1444 = vadd.f32 %v1442, %v1443
  %v1445 = vsel %vm1301, %v1293, 0.0
  %v1446 = vadd.f32 %v1444, %v1445
  %v1447 = vsel %vm1301, %v1294, 0.0
  %v1448 = vadd.f32 %v1446, %v1447
  %v1449 = vsel %vm1301, %v1295, 0.0
  %v1450 = vadd.f32 %v1448, %v1449
  %v1451 = vsel %vm1301, %v1296, 0.0
  %v1452 = vadd.f32 %v1450, %v1451
  %v1453 = vsel %vm1301, %v1297, 0.0
  %v1454 = vadd.f32 %v1452, %v1453
  %v1455 = vsel %vm1301, %v1298, 0.0
  %v1456 = vadd.f32 %v1454, %v1455
  %v1457 = vsel %vm1301, %v1299, 0.0
  %v1458 = vadd.f32 %v1456, %v1457
  %v1459 = vadd.f32 %v1381, %v1458
  %1460 = vst.msk [vmem:[%s3] sm:$0xff] %vm1301, %v1459
  // Predicated region
  $region14: #{tpu_custom_call.1} parent=0 // pred_check
    _
  $region15: #{tpu_custom_call.1} parent=0 // pred_check_branch
    %1462 = sbr.rel (0) target = $region17
  $region16: #{tpu_custom_call.1} parent=0 // pred_region
    _
  $region17: #{tpu_custom_call.1} parent=0 // pred_fallthru
    _
  // Predicated region
  $region18: #{tpu_custom_call.1} parent=0 // pred_check
    _
  $region19: #{tpu_custom_call.1} parent=0 // pred_check_branch
    %1464 = sbr.rel (0) target = $region21
  $region20: #{tpu_custom_call.1} parent=0 // pred_region
    _
  $region21: #{tpu_custom_call.1} parent=0 // pred_fallthru
    _
  // Predicated region
  $region22: #{tpu_custom_call.1} parent=0 // pred_check
    _
  $region23: #{tpu_custom_call.1} parent=0 // pred_check_branch
    %1466 = sbr.rel (0) target = $region25
  $region24: #{tpu_custom_call.1} parent=0 // pred_region
    _
  $region25: #{tpu_custom_call.1} parent=0 // pred_fallthru
    _
  // Predicated region
  $region26: #{tpu_custom_call.1} parent=0 // pred_check
    _
  $region27: #{tpu_custom_call.1} parent=0 // pred_check_branch
    %1468 = sbr.rel (0) target = $region29
  $region28: #{tpu_custom_call.1} parent=0 // pred_region
    _
  $region29: #{tpu_custom_call.1} parent=0 // pred_fallthru
    _

</llo_original>
